<compile_context>
chip_gen: v7x
topology: tpu7x:2x2x1
jax: 0.10.0
libtpu: 0.0.40
codegen_flags: <defaults>
</compile_context>

<pallas_src>
import functools

import jax
import jax.numpy as jnp
from jax.experimental import pallas as pl
from jax.experimental.pallas import tpu as pltpu

# ---- config (small synthetic shapes consistent with HRNet-W48 naive concat) ----
DATASETS_CATS = [19, 16, 7]            # cfg.DATASETS.DATASETS_CATS (3 datasets)
TOTAL_CATS = sum(DATASETS_CATS)        # 42 unified output classes
ACC_CATS = [0, 19, 35]                 # running offsets, as in __init__
HRNET_CHANNELS = (48, 96, 192, 384)    # HRNet-W48 branch widths
C_CONCAT = sum(HRNET_CHANNELS)         # 720 -> build_sem_seg_head(cfg, 720)
C_PROJ = 256                           # projection dim inside the head
N_PAD = 128                            # 42 classes padded to one full lane vreg
PIXEL_MEAN = jnp.array([123.675, 116.28, 103.53], jnp.float32)
PIXEL_STD = jnp.array([58.395, 57.12, 57.375], jnp.float32)


# ---------------- Pallas kernel 1: per-channel pixel normalization ----------------
def _normalize_kernel(x_ref, scale_ref, shift_ref, out_ref):
    # single fma per element: (x - mean) / std == x * (1/std) + (-mean/std)
    c = pl.program_id(0)
    out_ref[...] = x_ref[...] * scale_ref[c] + shift_ref[c]


def _choose_th(H, W):
    # ~1 MiB f32 (8,128)-aligned tiles along H; bounded regardless of image size.
    if H <= 8:
        return H
    target = max(8, (1 << 20) // (4 * W))
    th = max(8, (min(H, target) // 8) * 8)
    return H if th >= H else th


def normalize_images(x):
    """(x - pixel_mean) / pixel_std, x: [B, 3, H, W] float32 -> float32."""
    B, C, H, W = x.shape
    BC = B * C
    x3 = x.reshape(BC, H, W)
    inv_std = 1.0 / PIXEL_STD
    scale = jnp.tile(inv_std, B)                 # [BC] f32 -> SMEM
    shift = jnp.tile(-PIXEL_MEAN * inv_std, B)   # [BC] f32 -> SMEM
    th = _choose_th(H, W)
    out = pl.pallas_call(
        _normalize_kernel,
        out_shape=jax.ShapeDtypeStruct((BC, H, W), jnp.float32),
        grid=(BC, pl.cdiv(H, th)),
        in_specs=[pl.BlockSpec((1, th, W), lambda c, h: (c, h, 0)),
                  pl.BlockSpec(memory_space=pltpu.MemorySpace.SMEM),
                  pl.BlockSpec(memory_space=pltpu.MemorySpace.SMEM)],
        out_specs=pl.BlockSpec((1, th, W), lambda c, h: (c, h, 0)),
        compiler_params=pltpu.CompilerParams(
            dimension_semantics=("parallel", "parallel")),
    )(x3, scale, shift)
    return out.reshape(B, C, H, W)


# ------- Pallas kernel 2: fused naive-concat projection head (hot path) -------
def _head_kernel(feat_ref, w1_ref, b1_ref, proto_ref, out_ref):
    # 1x1 conv (720 -> 256, bf16 in / f32 acc) + bias + ReLU, then prototype
    # classification (256 -> 128 padded classes).  Both matmuls on the MXU.
    h = jnp.dot(feat_ref[...], w1_ref[...], preferred_element_type=jnp.float32)
    h = jnp.maximum(h + b1_ref[...], 0.0)
    out_ref[...] = jnp.dot(h.astype(jnp.bfloat16), proto_ref[...],
                           preferred_element_type=jnp.float32
                           ).astype(out_ref.dtype)


def _choose_tm(M):
    # Large row tiles amortize per-step grid overhead (~0.35us), but always
    # leave >=2 blocks when possible so a 'parallel' grid axis can shard
    # across both TensorCores on v7x.  Prefer an evenly dividing tile only if
    # it is not dramatically smaller than the largest feasible tile.
    cands = (2048, 1024, 512, 256, 128, 64, 32, 16, 8)
    feas = [c for c in cands if 2 * c <= M]
    if not feas:
        return M                       # single full-array block (legal)
    best = feas[0]
    for c in feas:
        if M % c == 0 and 2 * c >= best:
            return c
    return best                        # uneven grid -> masked edge block


def proj_head(feat_flat_bf16, w1_bf16, b1_f32, proto_bf16):
    """feat_flat_bf16: [M, 720] bf16; returns [M, N_PAD] bf16 (padded classes)."""
    M, cin = feat_flat_bf16.shape
    cp = w1_bf16.shape[1]
    ncls = proto_bf16.shape[1]

    tm = _choose_tm(M)
    n_blocks = pl.cdiv(M, tm)

    cost = pl.CostEstimate(
        flops=2 * M * (cin * cp + cp * ncls),
        transcendentals=0,
        bytes_accessed=(M * cin * 2 + cin * cp * 2 + cp * 4
                        + cp * ncls * 2 + M * ncls * 2),
    )

    return pl.pallas_call(
        _head_kernel,
        out_shape=jax.ShapeDtypeStruct((M, ncls), jnp.bfloat16),
        grid=(n_blocks,),
        in_specs=[pl.BlockSpec((tm, cin), lambda i: (i, 0)),
                  pl.BlockSpec((cin, cp), lambda i: (0, 0)),   # resident weights
                  pl.BlockSpec((1, cp), lambda i: (0, 0)),
                  pl.BlockSpec((cp, ncls), lambda i: (0, 0))],
        out_specs=pl.BlockSpec((tm, ncls), lambda i: (i, 0)),
        compiler_params=pltpu.CompilerParams(
            dimension_semantics=("parallel",),
            vmem_limit_bytes=32 * 1024 * 1024),
        cost_estimate=cost,
    )(feat_flat_bf16, w1_bf16, b1_f32, proto_bf16)


# ---------------- synthetic multi-scale backbone (glue) ----------------
def synthetic_backbone(x_norm, bb_weights):
    # TODO(synk): the full HRNet-W48 backbone (built externally via
    # build_backbone(cfg)) is not reproduced; a deterministic multi-scale
    # stand-in produces the four branch features (48/96/192/384 channels),
    # which are naive-concatenated CHANNELS-LAST at 1/4 resolution and emitted
    # directly in bf16 (no f32 HBM pass, no zero-channel padding in HBM).
    B, C, H, W = x_norm.shape
    Hf, Wf = H // 4, W // 4
    feats = []
    for k, (stride, ck) in enumerate(zip((4, 8, 16, 32), HRNET_CHANNELS)):
        hs, ws = H // stride, W // stride
        pooled = x_norm.reshape(B, C, hs, stride, ws, stride).mean(axis=(3, 5))
        # 1x1 conv 3->ck, produced directly in NHWC (channels-last)
        f = jnp.einsum('bchw,cd->bhwd', pooled, bb_weights[k])
        f = jax.image.resize(f, (B, Hf, Wf, ck), method='bilinear')
        feats.append(f.astype(jnp.bfloat16))
    return jnp.concatenate(feats, axis=-1)       # [B, Hf, Wf, 720] bf16


# ---------------- full eval-mode forward ----------------
def hrnet_naive_concat_forward(x, params, dataset_id=0):
    B, _, H, W = x.shape
    # images = [(x - pixel_mean) / pixel_std]
    x_norm = normalize_images(x)
    # features = backbone(images.tensor)  (synthetic stand-in, channels-last bf16)
    feat = synthetic_backbone(x_norm, params['backbone'])      # [B,Hf,Wf,720]
    Hf, Wf = feat.shape[1], feat.shape[2]
    M = B * Hf * Wf

    # outputs = proj_head(features)  -> unified logits over total_cats
    feat_flat = feat.reshape(M, C_CONCAT)                      # bf16, K=720
    w1 = params['w1'].astype(jnp.bfloat16)                     # [720, 256]
    proto = jnp.pad(params['proto'],
                    ((0, 0), (0, N_PAD - TOTAL_CATS))).astype(jnp.bfloat16)
    b1 = params['b1'].astype(jnp.float32)
    logits_flat = proj_head(feat_flat, w1, b1, proto)          # [M, 128] bf16

    # eval path: slice this dataset's classes, then nearest-upsample to the
    # input size (F.interpolate mode='nearest' == integer repeat) via a single
    # fused broadcast+reshape, casting to f32 in the same pass.
    a = ACC_CATS[dataset_id]
    n = DATASETS_CATS[dataset_id]
    logit = logits_flat[:, a:a + n].reshape(B, Hf, Wf, n).transpose(0, 3, 1, 2)
    sh, sw = H // Hf, W // Wf
    logit = jnp.broadcast_to(logit[:, :, :, None, :, None],
                             (B, n, Hf, sh, Wf, sw))
    return logit.reshape(B, n, H, W).astype(jnp.float32)


if __name__ == "__main__":
    key = jax.random.PRNGKey(0)
    k_img, k_bb, k_w1, k_proto = jax.random.split(key, 4)
    B, H, W = 2, 32, 32
    x = jax.random.uniform(k_img, (B, 3, H, W), jnp.float32, 0.0, 255.0)
    bb_keys = jax.random.split(k_bb, 4)
    params = {
        'backbone': [jax.random.normal(bb_keys[i], (3, ck), jnp.float32) * 0.1
                     for i, ck in enumerate(HRNET_CHANNELS)],
        'w1': jax.random.normal(k_w1, (C_CONCAT, C_PROJ), jnp.float32)
              * (1.0 / jnp.sqrt(jnp.float32(C_CONCAT))),
        'b1': jnp.zeros((1, C_PROJ), jnp.float32),
        'proto': jax.random.normal(k_proto, (C_PROJ, TOTAL_CATS), jnp.float32)
                 * (1.0 / jnp.sqrt(jnp.float32(C_PROJ))),
    }
    fwd = jax.jit(functools.partial(hrnet_naive_concat_forward, dataset_id=0))
    out = jax.block_until_ready(fwd(x, params))
    assert out.shape == (B, DATASETS_CATS[0], H, W), out.shape
    assert out.dtype == jnp.float32
    assert bool(jnp.isfinite(out).all())
    print("KERNEL_OK")
</pallas_src>

<mosaic_0001>
module attributes {stable_mosaic.version = 11 : i64} {
  func.func @_normalize_kernel(%arg0: i32, %arg1: i32, %arg2: memref<1x32x32xf32, #tpu.memory_space<vmem>>, %arg3: memref<6xf32, #tpu.memory_space<smem>>, %arg4: memref<6xf32, #tpu.memory_space<smem>>, %arg5: memref<1x32x32xf32, #tpu.memory_space<vmem>>) attributes {dimension_semantics = [#tpu.dimension_semantics<parallel>, #tpu.dimension_semantics<parallel>], iteration_bounds = array<i64: 6, 1>, scalar_prefetch = 0 : i64, scratch_operands = 0 : i64, tpu.core_type = #tpu.core_type<tc>, window_params = [{transform_indices = @transform_0, window_bounds = array<i64: 1, 32, 32>}, {transform_indices = @transform_1, window_bounds = array<i64: 6>}, {transform_indices = @transform_2, window_bounds = array<i64: 6>}, {transform_indices = @transform_3, window_bounds = array<i64: 1, 32, 32>}]} {
    %c0 = arith.constant 0 : index
    %c0_0 = arith.constant 0 : index
    %c0_1 = arith.constant 0 : index
    %0 = vector.load %arg2[%c0, %c0_0, %c0_1] : memref<1x32x32xf32, #tpu.memory_space<vmem>>, vector<1x32x32xf32>
    %1 = arith.index_cast %arg0 : i32 to index
    %2 = memref.load %arg3[%1] : memref<6xf32, #tpu.memory_space<smem>>
    %3 = vector.broadcast %2 : f32 to vector<1x32x32xf32>
    %4 = arith.mulf %0, %3 : vector<1x32x32xf32>
    %5 = arith.index_cast %arg0 : i32 to index
    %6 = memref.load %arg4[%5] : memref<6xf32, #tpu.memory_space<smem>>
    %7 = vector.broadcast %6 : f32 to vector<1x32x32xf32>
    %8 = arith.addf %4, %7 : vector<1x32x32xf32>
    %c0_2 = arith.constant 0 : index
    %c0_3 = arith.constant 0 : index
    %c0_4 = arith.constant 0 : index
    %9 = vector.load %arg5[%c0_2, %c0_3, %c0_4] : memref<1x32x32xf32, #tpu.memory_space<vmem>>, vector<1x32x32xf32>
    tpu.vector_store %arg5[%c0_2, %c0_3, %c0_4], %8 {strides = array<i32>} : memref<1x32x32xf32, #tpu.memory_space<vmem>>, vector<1x32x32xf32>,
    return
  }
  func.func @transform_0(%arg0: i32, %arg1: i32) -> (i32, i32, i32) {
    %c0_i32 = arith.constant 0 : i32
    %c0_i32_0 = arith.constant 0 : i32
    return %arg0, %arg1, %c0_i32 : i32, i32, i32
  }
  func.func @transform_1(%arg0: i32, %arg1: i32) -> i32 {
    %c0_i32 = arith.constant 0 : i32
    %c0_i32_0 = arith.constant 0 : i32
    return %c0_i32 : i32
  }
  func.func @transform_2(%arg0: i32, %arg1: i32) -> i32 {
    %c0_i32 = arith.constant 0 : i32
    %c0_i32_0 = arith.constant 0 : i32
    return %c0_i32 : i32
  }
  func.func @transform_3(%arg0: i32, %arg1: i32) -> (i32, i32, i32) {
    %c0_i32 = arith.constant 0 : i32
    %c0_i32_0 = arith.constant 0 : i32
    return %arg0, %arg1, %c0_i32 : i32, i32, i32
  }
}

module attributes {stable_mosaic.version = 11 : i64} {
  func.func @_head_kernel(%arg0: i32, %arg1: memref<64x720xbf16, #tpu.memory_space<vmem>>, %arg2: memref<720x256xbf16, #tpu.memory_space<vmem>>, %arg3: memref<1x256xf32, #tpu.memory_space<vmem>>, %arg4: memref<256x128xbf16, #tpu.memory_space<vmem>>, %arg5: memref<64x128xbf16, #tpu.memory_space<vmem>>) attributes {dimension_semantics = [#tpu.dimension_semantics<parallel>], iteration_bounds = array<i64: 2>, scalar_prefetch = 0 : i64, scratch_operands = 0 : i64, tpu.core_type = #tpu.core_type<tc>, window_params = [{transform_indices = @transform_0, window_bounds = array<i64: 64, 720>}, {pipeline_mode = #tpu.pipeline_mode<synchronous>, transform_indices = @transform_1, window_bounds = array<i64: 720, 256>}, {pipeline_mode = #tpu.pipeline_mode<synchronous>, transform_indices = @transform_2, window_bounds = array<i64: 1, 256>}, {pipeline_mode = #tpu.pipeline_mode<synchronous>, transform_indices = @transform_3, window_bounds = array<i64: 256, 128>}, {transform_indices = @transform_4, window_bounds = array<i64: 64, 128>}]} {
    %c0 = arith.constant 0 : index
    %c0_0 = arith.constant 0 : index
    %0 = vector.load %arg1[%c0, %c0_0] : memref<64x720xbf16, #tpu.memory_space<vmem>>, vector<64x720xbf16>
    %c0_1 = arith.constant 0 : index
    %c0_2 = arith.constant 0 : index
    %1 = vector.load %arg2[%c0_1, %c0_2] : memref<720x256xbf16, #tpu.memory_space<vmem>>, vector<720x256xbf16>
    %cst = arith.constant dense<0.000000e+00> : vector<64x256xf32>
    %2 = tpu.matmul %0, %1, %cst {dimension_numbers = #tpu.dot_dimension_numbers<[1], [0], [0], [1], [0, 0, 1, 1], [], []>} : vector<64x720xbf16>, vector<720x256xbf16>, vector<64x256xf32> -> vector<64x256xf32>
    %c0_3 = arith.constant 0 : index
    %c0_4 = arith.constant 0 : index
    %3 = vector.load %arg3[%c0_3, %c0_4] : memref<1x256xf32, #tpu.memory_space<vmem>>, vector<1x256xf32>
    %4 = vector.broadcast %3 : vector<1x256xf32> to vector<64x256xf32>
    %5 = arith.addf %2, %4 : vector<64x256xf32>
    %cst_5 = arith.constant 0.000000e+00 : f32
    %6 = vector.broadcast %cst_5 : f32 to vector<64x256xf32>
    %7 = arith.maximumf %5, %6 : vector<64x256xf32>
    %8 = arith.truncf %7 : vector<64x256xf32> to vector<64x256xbf16>
    %c0_6 = arith.constant 0 : index
    %c0_7 = arith.constant 0 : index
    %9 = vector.load %arg4[%c0_6, %c0_7] : memref<256x128xbf16, #tpu.memory_space<vmem>>, vector<256x128xbf16>
    %cst_8 = arith.constant dense<0.000000e+00> : vector<64x128xf32>
    %10 = tpu.matmul %8, %9, %cst_8 {dimension_numbers = #tpu.dot_dimension_numbers<[1], [0], [0], [1], [0, 0, 1, 1], [], []>} : vector<64x256xbf16>, vector<256x128xbf16>, vector<64x128xf32> -> vector<64x128xf32>
    %11 = arith.truncf %10 : vector<64x128xf32> to vector<64x128xbf16>
    %c0_9 = arith.constant 0 : index
    %c0_10 = arith.constant 0 : index
    %12 = vector.load %arg5[%c0_9, %c0_10] : memref<64x128xbf16, #tpu.memory_space<vmem>>, vector<64x128xbf16>
    tpu.vector_store %arg5[%c0_9, %c0_10], %11 {strides = array<i32>} : memref<64x128xbf16, #tpu.memory_space<vmem>>, vector<64x128xbf16>,
    return
  }
  func.func @transform_0(%arg0: i32) -> (i32, i32) {
    %c0_i32 = arith.constant 0 : i32
    %c0_i32_0 = arith.constant 0 : i32
    return %arg0, %c0_i32 : i32, i32
  }
  func.func @transform_1(%arg0: i32) -> (i32, i32) {
    %c0_i32 = arith.constant 0 : i32
    %c0_i32_0 = arith.constant 0 : i32
    %c0_i32_1 = arith.constant 0 : i32
    return %c0_i32, %c0_i32_0 : i32, i32
  }
  func.func @transform_2(%arg0: i32) -> (i32, i32) {
    %c0_i32 = arith.constant 0 : i32
    %c0_i32_0 = arith.constant 0 : i32
    %c0_i32_1 = arith.constant 0 : i32
    return %c0_i32, %c0_i32_0 : i32, i32
  }
  func.func @transform_3(%arg0: i32) -> (i32, i32) {
    %c0_i32 = arith.constant 0 : i32
    %c0_i32_0 = arith.constant 0 : i32
    %c0_i32_1 = arith.constant 0 : i32
    return %c0_i32, %c0_i32_0 : i32, i32
  }
  func.func @transform_4(%arg0: i32) -> (i32, i32) {
    %c0_i32 = arith.constant 0 : i32
    %c0_i32_0 = arith.constant 0 : i32
    return %arg0, %c0_i32 : i32, i32
  }
}

</mosaic_0001>

<llo_original>
// kernel: tile.10
$region0: #{tile.10}
  #allocation0 [shape = 's32[1]{0}', space=sflag, size = 0x4, scoped, tag = 'scoped memory for tile.10']
  %s0 = inlined_call_operand.vmem [shape: f32[3], index: 0, kind: input, shape index: {}]
  %s1 = inlined_call_operand.vmem [shape: f32[2,3], index: 1, kind: output, shape index: {}]
  // Predicated region
  $region2: #{tile.10} parent=0 // pred_check
    _
  $region3: #{tile.10} parent=0 // pred_check_branch
    %3 = sbr.rel (0) target = $region5
  $region4: #{tile.10} parent=0 // pred_region
    _
  $region5: #{tile.10} parent=0 // pred_fallthru
    _
  %v4 = vld [vmem:[%s0] ss:$0 sm:$0xff]
  %5 = vst [vmem:[%s1] sm:$0x3] %v4

// kernel: tile.11
$region0: #{tile.11}
  %s0 = inlined_call_operand.vmem [shape: f32[2,3], index: 0, kind: input, shape index: {}]
  %s1 = inlined_call_operand.vmem [shape: f32[6], index: 1, kind: output, shape index: {}]
  $region1: #{tile.11} parent=0
    #allocation0 [shape = 'u8[4096]{0}', space=vmem, size = 0x1000, scoped, tag = 'scoped mem for output reshape']
    #allocation1 [shape = 'u8[4096]{0}', space=vmem, size = 0x1000, scoped, tag = 'scoped mem for input reshape']
    %s3 = sshllo.u32 0, 2
    %v4 = vld [vmem:[%s0] sm:%s3]
    %5 = vst [vmem:[#allocation1] sm:%s3] %v4
    %v6 = vld [vmem:[#allocation1] sm:$0x1]
    %vm7 = vcmask 23552
    %8 = vst.msk [vmem:[#allocation0] sm:$0x1] %vm7, %v6
    %s9 = scalar_lea.vmem [#allocation1], 1
    %v10 = vld [vmem:[%s9] sm:$0x1]
    %11 = vrot.lane.b32.xlu0 %v10, 3
    %v12 = vpop.permute.xlu0 %11
    %vm13 = vcmask 48152
    %14 = vst.msk [vmem:[#allocation0] sm:$0x1] %vm13, %v12
    %s16 = sshllo.u32 0, 1
    %v18 = vld [vmem:[#allocation0] sm:%s16]
    %s19 = sshllo.u32 0, 1
    %20 = vst [vmem:[%s1] sm:%s19] %v18

// kernel: hrnet_naive_concat_forward.2
$region0: #{hrnet_naive_concat_forward.2}
  #allocation0 [shape = 'u32[]', space=smem, size = 0x4, offset = 0x4, fixed_abs, tag = 'smem constant byte address 0x4 - core index']
  #allocation1 [shape = 'u32[144,128]{1,0:T(1,128)}', space=vmem, size = 0x12000, scoped, tag = 'internal scratch']
  %s0 = inlined_call_operand.hbm [shape: f32[6,32,32], index: 0, kind: input, shape index: {}]
  %s1 = inlined_call_operand.vmem [shape: f32[6], index: 1, kind: input, shape index: {}]
  %s2 = inlined_call_operand.vmem [shape: f32[6], index: 2, kind: input, shape index: {}]
  %s3 = inlined_call_operand.vmem [shape: f32[6,32,32], index: 3, kind: output, shape index: {}]
  %s4 = sld [smem:[#allocation0]]
  $region57: #{hrnet_naive_concat_forward.2} parent=0
    _
  %s6 = ssub.s32 1, %s4
  %s7 = scalar_select 0, %s6, %s4
  $region1: #{hrnet_naive_concat_forward.2} parent=0
    #allocation2 [shape = 'u8[32768]{0}', space=vmem, size = 0x8000, scoped, tag = 'input window, operand 0']
    #allocation3 [shape = 's32[2]{0}', space=sflag, size = 0x8, scoped, tag = 'scoped memory for hrnet_naive_concat_forward.2']
    #allocation4 [shape = 's32[2]{0}', space=sflag, size = 0x8, scoped, tag = 'scoped memory for hrnet_naive_concat_forward.2']
    #allocation5 [shape = 'u8[512]{0}', space=smem, size = 0x200, scoped, tag = 'input window, operand 1, single buffered']
    #allocation6 [shape = 'u8[512]{0}', space=smem, size = 0x200, scoped, tag = 'input window, operand 2, single buffered']
    #allocation7 [shape = 's32[1]{0}', space=sflag, size = 0x4, scoped, tag = 'scoped memory for hrnet_naive_concat_forward.2']
    %8 = vsyncpa [#allocation3], 0
    %s9 = scalar_lea.sflag [#allocation3], 1
    %10 = vsyncpa %s9, 0
    %11 = vsyncpa [#allocation4], 0
    %12 = vsyncpa [#allocation7], 0
    loop: start=0, step=1, limit=8
    $region2: #{hrnet_naive_concat_forward.2} parent=1 // loop_pre_header
      _
    $region3: #{hrnet_naive_concat_forward.2} parent=1 // loop_header
      %s14 = sphi 0, %s18
      %p15 = scmp.ge.s32.totalorder %s14, 8
      %s21 = sphi 0, %s33
      %s22 = sphi 0, %s29
      %s23 = sphi 0, %s21
      %s24 = sphi 0, %s22
      %s25 = sphi 0, %s23
      %s26 = sphi 0, %s24
      %s38 = sphi 0, %s40
      %s41 = sphi 0, %s38
      %s42 = sphi 0, %s41
      %s58 = sphi 0, %s42
      %s62 = sphi 0, %s62
      %s64 = sphi 0, %s62
      %s65 = sphi 0, %s64
      %s79 = sphi 0, %s65
      %s83 = sphi 0, %s83
      %s85 = sphi 0, %s83
      %s86 = sphi 0, %s85
      %s100 = sphi 0, %s86
      %s108 = sphi 0, %s110
      %s111 = sphi 0, %s108
      %s112 = sphi 0, %s111
      %s128 = sphi 0, %s112
    $region4: #{hrnet_naive_concat_forward.2} parent=1 // loop_header_branch
      %17 = sbr.rel (%p15) target = $region8
    $region5: #{hrnet_naive_concat_forward.2} parent=1 // loop_body
      %s19 = ssub.s32 %s14, 1
      %s20 = ssub.s32 %s14, 2
      %s27 = sadd.s32 1, %s22
      %p28 = scmp.ge.s32.totalorder %s27, 1
      %s29 = scalar_select %p28, 0, %s27
      %s30 = sadd.s32 1, %s21
      %s31 = scalar_select %p28, %s30, %s21
      %p32 = scmp.ge.s32.totalorder %s31, 6
      %s33 = scalar_select %p32, 0, %s31
      %s34 = ssub.s32 %s21, %s33
      %s35 = ssub.s32 %s22, %s29
      %s36 = sor.u32 %s34, %s35
      %p37 = scmp.eq.s32.totalorder %s36, 0
      %s39 = sadd.s32 %s38, 1
      %s40 = scalar_select %p37, %s38, %s39
      %p43 = pneg %p37
      %p44 = scmp.eq.s32.totalorder %s14, 5
      %p45 = por %p43, %p44
      %p46 = scmp.ne.s32.totalorder %s38, %s41
      %p47 = scmp.eq.s32.totalorder %s14, 0
      %p48 = por %p46, %p47
      %p49 = scmp.ne.s32.totalorder %s38, %s41
      %p50 = scmp.eq.s32.totalorder %s19, 5
      %p51 = por %p49, %p50
      %p52 = scmp.ne.s32.totalorder %s41, %s42
      %p53 = scmp.eq.s32.totalorder %s19, 0
      %p54 = por %p52, %p53
      %p55 = scmp.ne.s32.totalorder %s41, %s42
      %p56 = scmp.eq.s32.totalorder %s20, 5
      %p57 = por %p55, %p56
      %p59 = scmp.ne.s32.totalorder %s42, %s58
      %p60 = scmp.eq.s32.totalorder %s20, 0
      %p61 = por %p59, %p60
      %s63 = sadd.s32 %s62, 1
      %p66 = scmp.eq.s32.totalorder %s14, 5
      %p67 = scmp.ne.s32.totalorder %s62, %s64
      %p68 = scmp.eq.s32.totalorder %s14, 0
      %p69 = por %p67, %p68
      %p70 = scmp.ne.s32.totalorder %s62, %s64
      %p71 = scmp.eq.s32.totalorder %s19, 5
      %p72 = por %p70, %p71
      %p73 = scmp.ne.s32.totalorder %s64, %s65
      %p74 = scmp.eq.s32.totalorder %s19, 0
      %p75 = por %p73, %p74
      %p76 = scmp.ne.s32.totalorder %s64, %s65
      %p77 = scmp.eq.s32.totalorder %s20, 5
      %p78 = por %p76, %p77
      %p80 = scmp.ne.s32.totalorder %s65, %s79
      %p81 = scmp.eq.s32.totalorder %s20, 0
      %p82 = por %p80, %p81
      %s84 = sadd.s32 %s83, 1
      %p87 = scmp.eq.s32.totalorder %s14, 5
      %p88 = scmp.ne.s32.totalorder %s83, %s85
      %p89 = scmp.eq.s32.totalorder %s14, 0
      %p90 = por %p88, %p89
      %p91 = scmp.ne.s32.totalorder %s83, %s85
      %p92 = scmp.eq.s32.totalorder %s19, 5
      %p93 = por %p91, %p92
      %p94 = scmp.ne.s32.totalorder %s85, %s86
      %p95 = scmp.eq.s32.totalorder %s19, 0
      %p96 = por %p94, %p95
      %p97 = scmp.ne.s32.totalorder %s85, %s86
      %p98 = scmp.eq.s32.totalorder %s20, 5
      %p99 = por %p97, %p98
      %p101 = scmp.ne.s32.totalorder %s86, %s100
      %p102 = scmp.eq.s32.totalorder %s20, 0
      %p103 = por %p101, %p102
      %s104 = ssub.s32 %s21, %s33
      %s105 = ssub.s32 %s22, %s29
      %s106 = sor.u32 %s104, %s105
      %p107 = scmp.eq.s32.totalorder %s106, 0
      %s109 = sadd.s32 %s108, 1
      %s110 = scalar_select %p107, %s108, %s109
      %p113 = pneg %p107
      %p114 = scmp.eq.s32.totalorder %s14, 5
      %p115 = por %p113, %p114
      %p116 = scmp.ne.s32.totalorder %s108, %s111
      %p117 = scmp.eq.s32.totalorder %s14, 0
      %p118 = por %p116, %p117
      %p119 = scmp.ne.s32.totalorder %s108, %s111
      %p120 = scmp.eq.s32.totalorder %s19, 5
      %p121 = por %p119, %p120
      %p122 = scmp.ne.s32.totalorder %s111, %s112
      %p123 = scmp.eq.s32.totalorder %s19, 0
      %p124 = por %p122, %p123
      %p125 = scmp.ne.s32.totalorder %s111, %s112
      %p126 = scmp.eq.s32.totalorder %s20, 5
      %p127 = por %p125, %p126
      %p129 = scmp.ne.s32.totalorder %s112, %s128
      %p130 = scmp.eq.s32.totalorder %s20, 0
      %p131 = por %p129, %p130
      %p132 = scmp.le.s32.totalorder 1, %s14
      %p133 = scmp.lt.s32.totalorder %s14, 7
      %p134 = pnand %p132, %p133
      %p135 = pneg %p134
      // Predicated region
      $region9: #{hrnet_naive_concat_forward.2} parent=5 // pred_check
        _
      $region10: #{hrnet_naive_concat_forward.2} parent=5 // pred_check_branch
        %137 = sbr.rel (%p134) target = $region12
      $region11: #{hrnet_naive_concat_forward.2} parent=5 // pred_region
        %s138 = ssub.s32 %s14, 1
        // Predicated region
        $region13: #{hrnet_naive_concat_forward.2} parent=11 // pred_check
          %p139 = pneg %p75
        $region14: #{hrnet_naive_concat_forward.2} parent=11 // pred_check_branch
          %141 = sbr.rel (%p139) target = $region16
        $region15: #{hrnet_naive_concat_forward.2} parent=11 // pred_region
          %s143 = ssub.s32 16, 16
          %144 = vsyncadd [#allocation4], %s143
          %s146 = sshll.u32 %s1, 4
          %s147 = int_to_ptr.vmem [resolvable:$true] %s146
          %149 = dma.vmem_to_smem %s147, 16, [#allocation5], [#allocation4]
        $region16: #{hrnet_naive_concat_forward.2} parent=11 // pred_fallthru
          _
        // Predicated region
        $region17: #{hrnet_naive_concat_forward.2} parent=11 // pred_check
          %p150 = pneg %p96
        $region18: #{hrnet_naive_concat_forward.2} parent=11 // pred_check_branch
          %152 = sbr.rel (%p150) target = $region20
        $region19: #{hrnet_naive_concat_forward.2} parent=11 // pred_region
          %s154 = ssub.s32 16, 16
          %155 = vsyncadd [#allocation7], %s154
          %s157 = sshll.u32 %s2, 4
          %s158 = int_to_ptr.vmem [resolvable:$true] %s157
          %160 = dma.vmem_to_smem %s158, 16, [#allocation6], [#allocation7]
        $region20: #{hrnet_naive_concat_forward.2} parent=11 // pred_fallthru
          _
      $region12: #{hrnet_naive_concat_forward.2} parent=5 // pred_fallthru
        _
      %p161 = scmp.lt.s32.totalorder %s14, 6
      // Predicated region
      $region21: #{hrnet_naive_concat_forward.2} parent=5 // pred_check
        %p162 = pneg %p161
      $region22: #{hrnet_naive_concat_forward.2} parent=5 // pred_check_branch
        %164 = sbr.rel (%p162) target = $region24
      $region23: #{hrnet_naive_concat_forward.2} parent=5 // pred_region
        // Predicated region
        $region25: #{hrnet_naive_concat_forward.2} parent=23 // pred_check
          %p165 = pneg %p48
        $region26: #{hrnet_naive_concat_forward.2} parent=23 // pred_check_branch
          %167 = sbr.rel (%p165) target = $region28
        $region27: #{hrnet_naive_concat_forward.2} parent=23 // pred_region
          %s168 = sand.u32 %s38, 1
          %s169 = scalar_lea.sflag [#allocation3], %s168
          %s170 = sand.u32 %s38, 1
          %s171 = smul.addr %s170, 32
          %s172 = scalar_lea.vmem [#allocation2], %s171
          %s173 = smul.u32 4, %s22
          %s175 = ssub.s32 512, 512
          %176 = vsyncadd %s169, %s175
          %s177 = smul.addr %s21, 4
          %s178 = sadd.s32 %s173, %s177
          %s179 = smul.addr %s178, 128
          %s180 = scalar_lea.hbm %s0, %s179
          %s181 = sshll.u32 %s172, 4
          %s182 = int_to_ptr.vmem [resolvable:$true] %s181
          %187 = dma.hbm_to_vmem [thread:$0]  %s180, 512, %s182, %s169, 128, 128, 8
        $region28: #{hrnet_naive_concat_forward.2} parent=23 // pred_fallthru
          _
      $region24: #{hrnet_naive_concat_forward.2} parent=5 // pred_fallthru
        _
      %p188 = scmp.le.s32.totalorder 1, %s14
      %p189 = scmp.lt.s32.totalorder %s14, 7
      %p190 = pnand %p188, %p189
      %p191 = pneg %p190
      // Predicated region
      $region29: #{hrnet_naive_concat_forward.2} parent=5 // pred_check
        _
      $region30: #{hrnet_naive_concat_forward.2} parent=5 // pred_check_branch
        %193 = sbr.rel (%p190) target = $region32
      $region31: #{hrnet_naive_concat_forward.2} parent=5 // pred_region
        %s194 = ssub.s32 %s14, 1
        %s195 = sand.u32 %s41, 1
        %s196 = scalar_lea.sflag [#allocation3], %s195
        %s197 = sand.u32 %s41, 1
        %s198 = smul.addr %s197, 32
        %s199 = scalar_lea.vmem [#allocation2], %s198
        // Predicated region
        $region33: #{hrnet_naive_concat_forward.2} parent=31 // pred_check
          %p200 = pneg %p54
        $region34: #{hrnet_naive_concat_forward.2} parent=31 // pred_check_branch
          %202 = sbr.rel (%p200) target = $region36
        $region35: #{hrnet_naive_concat_forward.2} parent=31 // pred_region
          %203 = dma.done %s196, 512
        $region36: #{hrnet_naive_concat_forward.2} parent=31 // pred_fallthru
          _
        // Predicated region
        $region37: #{hrnet_naive_concat_forward.2} parent=31 // pred_check
          %p204 = pneg %p75
        $region38: #{hrnet_naive_concat_forward.2} parent=31 // pred_check_branch
          %206 = sbr.rel (%p204) target = $region40
        $region39: #{hrnet_naive_concat_forward.2} parent=31 // pred_region
          %207 = dma.done [#allocation4], 16
        $region40: #{hrnet_naive_concat_forward.2} parent=31 // pred_fallthru
          _
        // Predicated region
        $region41: #{hrnet_naive_concat_forward.2} parent=31 // pred_check
          %p208 = pneg %p96
        $region42: #{hrnet_naive_concat_forward.2} parent=31 // pred_check_branch
          %210 = sbr.rel (%p208) target = $region44
        $region43: #{hrnet_naive_concat_forward.2} parent=31 // pred_region
          %211 = dma.done [#allocation7], 16
        $region44: #{hrnet_naive_concat_forward.2} parent=31 // pred_fallthru
          _
        %212 = sfence
        %s213 = sand.u32 %s41, 1
        %s214 = scalar_lea.sflag [#allocation3], %s213
        %s215 = sand.u32 %s41, 1
        %s216 = smul.addr %s215, 32
        %s217 = scalar_lea.vmem [#allocation2], %s216
        %p218 = pneg %p54
        %p219 = pneg %p51
        %p220 = pneg %p75
        %p221 = pneg %p72
        %p222 = pneg %p96
        %p223 = pneg %p93
        %p224 = pneg %p124
        %p225 = pneg %p121
        %s226 = smul.u32 4, %s24
        %p227 = scmp.lt.s32.totalorder %s23, 5
        %s228 = scalar_select %p227, %s23, 5
        %p229 = scmp.lt.s32.totalorder %s226, 3
        %s230 = scalar_select %p229, %s226, 3
        %s231 = smul.addr %s228, 4
        %s232 = sadd.s32 %s230, %s231
        %s233 = smul.addr %s232, 8
        %s234 = scalar_lea.vmem %s3, %s233
        %s235 = smul.u32 4, %s24
        %s236 = smul.u32 4, %s24
        %p237 = scmp.lt.s32.totalorder %s23, 5
        %s238 = scalar_select %p237, %s23, 5
        %p239 = scmp.lt.s32.totalorder %s236, 3
        %s240 = scalar_select %p239, %s236, 3
        %s241 = smul.addr %s238, 4
        %s242 = sadd.s32 %s240, %s241
        %s243 = smul.addr %s242, 8
        %s244 = scalar_lea.vmem %s3, %s243
        %s245 = smul.u32 4, %s24
        %v246 = vld [vmem:[%s199] sm:$0xff]
        %v247 = vld [vmem:[%s199 + $0x8] sm:$0xff]
        %v248 = vld [vmem:[%s199 + $0x10] sm:$0xff]
        %v249 = vld [vmem:[%s199 + $0x18] sm:$0xff]
        %s250 = sld [smem:[#allocation5 + %s23]]
        %v251 = vstv %s250
        %v252 = vmul.f32 %v246, %v251
        %v253 = vmul.f32 %v247, %v251
        %v254 = vmul.f32 %v248, %v251
        %v255 = vmul.f32 %v249, %v251
        %s256 = sld [smem:[#allocation6 + %s23]]
        %v257 = vstv %s256
        %v258 = vadd.f32 %v252, %v257
        %v259 = vadd.f32 %v253, %v257
        %v260 = vadd.f32 %v254, %v257
        %v261 = vadd.f32 %v255, %v257
        %vm262 = vcmask 261120
        %263 = vst.msk [vmem:[%s244] sm:$0xff] %vm262, %v258
        %264 = vst.msk [vmem:[%s244 + $0x8] sm:$0xff] %vm262, %v259
        %265 = vst.msk [vmem:[%s244 + $0x10] sm:$0xff] %vm262, %v260
        %266 = vst.msk [vmem:[%s244 + $0x18] sm:$0xff] %vm262, %v261
        %s267 = smul.u32 4, %s24
        %p268 = scmp.lt.s32.totalorder %s23, 5
        %s269 = scalar_select %p268, %s23, 5
        %p270 = scmp.lt.s32.totalorder %s267, 3
        %s271 = scalar_select %p270, %s267, 3
        %s272 = smul.addr %s269, 4
        %s273 = sadd.s32 %s271, %s272
        %s274 = smul.addr %s273, 8
        %s275 = scalar_lea.vmem %s3, %s274
        // Predicated region
        $region45: #{hrnet_naive_concat_forward.2} parent=31 // pred_check
          %p276 = pneg %p121
        $region46: #{hrnet_naive_concat_forward.2} parent=31 // pred_check_branch
          %278 = sbr.rel (%p276) target = $region48
        $region47: #{hrnet_naive_concat_forward.2} parent=31 // pred_region
          %s279 = smul.u32 4, %s24
        $region48: #{hrnet_naive_concat_forward.2} parent=31 // pred_fallthru
          _
      $region32: #{hrnet_naive_concat_forward.2} parent=5 // pred_fallthru
        _
      %p280 = scmp.le.s32.totalorder 2, %s14
      // Predicated region
      $region49: #{hrnet_naive_concat_forward.2} parent=5 // pred_check
        %p281 = pneg %p280
      $region50: #{hrnet_naive_concat_forward.2} parent=5 // pred_check_branch
        %283 = sbr.rel (%p281) target = $region52
      $region51: #{hrnet_naive_concat_forward.2} parent=5 // pred_region
        %s284 = ssub.s32 %s14, 2
        // Predicated region
        $region53: #{hrnet_naive_concat_forward.2} parent=51 // pred_check
          %p285 = pneg %p127
        $region54: #{hrnet_naive_concat_forward.2} parent=51 // pred_check_branch
          %287 = sbr.rel (%p285) target = $region56
        $region55: #{hrnet_naive_concat_forward.2} parent=51 // pred_region
          %s288 = smul.u32 4, %s26
          %p289 = scmp.lt.s32.totalorder %s25, 5
          %s290 = scalar_select %p289, %s25, 5
          %p291 = scmp.lt.s32.totalorder %s288, 3
          %s292 = scalar_select %p291, %s288, 3
          %s293 = smul.addr %s290, 4
          %s294 = sadd.s32 %s292, %s293
          %s295 = smul.addr %s294, 8
          %s296 = scalar_lea.vmem %s3, %s295
        $region56: #{hrnet_naive_concat_forward.2} parent=51 // pred_fallthru
          _
      $region52: #{hrnet_naive_concat_forward.2} parent=5 // pred_fallthru
        _
    $region6: #{hrnet_naive_concat_forward.2} parent=1 // loop_footer
      %s18 = sadd.s32 1, %s14
    $region7: #{hrnet_naive_concat_forward.2} parent=1 // loop_footer_branch
      %13 = sbr.rel target = $region3
    $region8: #{hrnet_naive_concat_forward.2} parent=1 // loop_exit
      _
    %297 = vsyncpa [#allocation3], 1
    %s298 = scalar_lea.sflag [#allocation3], 1
    %299 = vsyncpa %s298, 1
    %300 = vsyncpa [#allocation4], 1
    %s301 = scalar_lea.sflag [#allocation4], 1
    %302 = vsyncpa %s301, 1
    %303 = vsyncpa [#allocation7], 1

// kernel: hrnet_naive_concat_forward.3
$region0: #{hrnet_naive_concat_forward.3}
  #allocation0 [shape = 'u32[]', space=smem, size = 0x4, offset = 0x4, fixed_abs, tag = 'smem constant byte address 0x4 - core index']
  #allocation1 [shape = 'u32[144,128]{1,0:T(1,128)}', space=vmem, size = 0x12000, scoped, tag = 'internal scratch']
  %s0 = inlined_call_operand.vmem [shape: bf16[128,720], index: 0, kind: input, shape index: {}]
  %s1 = inlined_call_operand.vmem [shape: bf16[720,256], index: 1, kind: input, shape index: {}]
  %s2 = inlined_call_operand.vmem [shape: f32[1,256], index: 2, kind: input, shape index: {}]
  %s3 = inlined_call_operand.vmem [shape: bf16[256,128], index: 3, kind: input, shape index: {}]
  %s4 = inlined_call_operand.vmem [shape: bf16[128,128], index: 4, kind: output, shape index: {}]
  %s5 = sld [smem:[#allocation0]]
  $region49: #{hrnet_naive_concat_forward.3} parent=0
    _
  %s7 = ssub.s32 1, %s5
  %s8 = scalar_select 0, %s7, %s5
  loop: start=0, step=1, limit=4
  $region2: #{hrnet_naive_concat_forward.3} parent=0 // loop_pre_header
    _
  $region3: #{hrnet_naive_concat_forward.3} parent=0 // loop_header
    %s10 = sphi 0, %s14
    %p11 = scmp.ge.s32.totalorder %s10, 4
    %s20 = sphi 0, %s22
    %s23 = sphi 0, %s20
    %s24 = sphi 0, %s23
    %s40 = sphi 0, %s24
    %s44 = sphi 0, %s44
    %s46 = sphi 0, %s44
    %s47 = sphi 0, %s46
    %s61 = sphi 0, %s47
    %s65 = sphi 0, %s65
    %s67 = sphi 0, %s65
    %s68 = sphi 0, %s67
    %s82 = sphi 0, %s68
    %s86 = sphi 0, %s86
    %s88 = sphi 0, %s86
    %s89 = sphi 0, %s88
    %s103 = sphi 0, %s89
    %s109 = sphi 0, %s111
    %s112 = sphi 0, %s109
    %s113 = sphi 0, %s112
    %s129 = sphi 0, %s113
  $region4: #{hrnet_naive_concat_forward.3} parent=0 // loop_header_branch
    %13 = sbr.rel (%p11) target = $region8
  $region5: #{hrnet_naive_concat_forward.3} parent=0 // loop_body
    %s15 = ssub.s32 %s10, 1
    %s16 = ssub.s32 %s10, 2
    %s17 = sadd.s32 %s10, 1
    %s18 = ssub.s32 %s10, %s17
    %p19 = scmp.eq.s32.totalorder %s18, 0
    %s21 = sadd.s32 %s20, 1
    %s22 = scalar_select %p19, %s20, %s21
    %p25 = pneg %p19
    %p26 = scmp.eq.s32.totalorder %s10, 1
    %p27 = por %p25, %p26
    %p28 = scmp.ne.s32.totalorder %s20, %s23
    %p29 = scmp.eq.s32.totalorder %s10, 0
    %p30 = por %p28, %p29
    %p31 = scmp.ne.s32.totalorder %s20, %s23
    %p32 = scmp.eq.s32.totalorder %s15, 1
    %p33 = por %p31, %p32
    %p34 = scmp.ne.s32.totalorder %s23, %s24
    %p35 = scmp.eq.s32.totalorder %s15, 0
    %p36 = por %p34, %p35
    %p37 = scmp.ne.s32.totalorder %s23, %s24
    %p38 = scmp.eq.s32.totalorder %s16, 1
    %p39 = por %p37, %p38
    %p41 = scmp.ne.s32.totalorder %s24, %s40
    %p42 = scmp.eq.s32.totalorder %s16, 0
    %p43 = por %p41, %p42
    %s45 = sadd.s32 %s44, 1
    %p48 = scmp.eq.s32.totalorder %s10, 1
    %p49 = scmp.ne.s32.totalorder %s44, %s46
    %p50 = scmp.eq.s32.totalorder %s10, 0
    %p51 = por %p49, %p50
    %p52 = scmp.ne.s32.totalorder %s44, %s46
    %p53 = scmp.eq.s32.totalorder %s15, 1
    %p54 = por %p52, %p53
    %p55 = scmp.ne.s32.totalorder %s46, %s47
    %p56 = scmp.eq.s32.totalorder %s15, 0
    %p57 = por %p55, %p56
    %p58 = scmp.ne.s32.totalorder %s46, %s47
    %p59 = scmp.eq.s32.totalorder %s16, 1
    %p60 = por %p58, %p59
    %p62 = scmp.ne.s32.totalorder %s47, %s61
    %p63 = scmp.eq.s32.totalorder %s16, 0
    %p64 = por %p62, %p63
    %s66 = sadd.s32 %s65, 1
    %p69 = scmp.eq.s32.totalorder %s10, 1
    %p70 = scmp.ne.s32.totalorder %s65, %s67
    %p71 = scmp.eq.s32.totalorder %s10, 0
    %p72 = por %p70, %p71
    %p73 = scmp.ne.s32.totalorder %s65, %s67
    %p74 = scmp.eq.s32.totalorder %s15, 1
    %p75 = por %p73, %p74
    %p76 = scmp.ne.s32.totalorder %s67, %s68
    %p77 = scmp.eq.s32.totalorder %s15, 0
    %p78 = por %p76, %p77
    %p79 = scmp.ne.s32.totalorder %s67, %s68
    %p80 = scmp.eq.s32.totalorder %s16, 1
    %p81 = por %p79, %p80
    %p83 = scmp.ne.s32.totalorder %s68, %s82
    %p84 = scmp.eq.s32.totalorder %s16, 0
    %p85 = por %p83, %p84
    %s87 = sadd.s32 %s86, 1
    %p90 = scmp.eq.s32.totalorder %s10, 1
    %p91 = scmp.ne.s32.totalorder %s86, %s88
    %p92 = scmp.eq.s32.totalorder %s10, 0
    %p93 = por %p91, %p92
    %p94 = scmp.ne.s32.totalorder %s86, %s88
    %p95 = scmp.eq.s32.totalorder %s15, 1
    %p96 = por %p94, %p95
    %p97 = scmp.ne.s32.totalorder %s88, %s89
    %p98 = scmp.eq.s32.totalorder %s15, 0
    %p99 = por %p97, %p98
    %p100 = scmp.ne.s32.totalorder %s88, %s89
    %p101 = scmp.eq.s32.totalorder %s16, 1
    %p102 = por %p100, %p101
    %p104 = scmp.ne.s32.totalorder %s89, %s103
    %p105 = scmp.eq.s32.totalorder %s16, 0
    %p106 = por %p104, %p105
    %s107 = ssub.s32 %s10, %s17
    %p108 = scmp.eq.s32.totalorder %s107, 0
    %s110 = sadd.s32 %s109, 1
    %s111 = scalar_select %p108, %s109, %s110
    %p114 = pneg %p108
    %p115 = scmp.eq.s32.totalorder %s10, 1
    %p116 = por %p114, %p115
    %p117 = scmp.ne.s32.totalorder %s109, %s112
    %p118 = scmp.eq.s32.totalorder %s10, 0
    %p119 = por %p117, %p118
    %p120 = scmp.ne.s32.totalorder %s109, %s112
    %p121 = scmp.eq.s32.totalorder %s15, 1
    %p122 = por %p120, %p121
    %p123 = scmp.ne.s32.totalorder %s112, %s113
    %p124 = scmp.eq.s32.totalorder %s15, 0
    %p125 = por %p123, %p124
    %p126 = scmp.ne.s32.totalorder %s112, %s113
    %p127 = scmp.eq.s32.totalorder %s16, 1
    %p128 = por %p126, %p127
    %p130 = scmp.ne.s32.totalorder %s113, %s129
    %p131 = scmp.eq.s32.totalorder %s16, 0
    %p132 = por %p130, %p131
    %p133 = scmp.le.s32.totalorder 1, %s10
    %p134 = scmp.lt.s32.totalorder %s10, 3
    %p135 = pnand %p133, %p134
    %p136 = pneg %p135
    // Predicated region
    $region9: #{hrnet_naive_concat_forward.3} parent=5 // pred_check
      _
    $region10: #{hrnet_naive_concat_forward.3} parent=5 // pred_check_branch
      %138 = sbr.rel (%p135) target = $region12
    $region11: #{hrnet_naive_concat_forward.3} parent=5 // pred_region
      %s139 = ssub.s32 %s10, 1
      // Predicated region
      $region13: #{hrnet_naive_concat_forward.3} parent=11 // pred_check
        %p140 = pneg %p57
      $region14: #{hrnet_naive_concat_forward.3} parent=11 // pred_check_branch
        %142 = sbr.rel (%p140) target = $region16
      $region15: #{hrnet_naive_concat_forward.3} parent=11 // pred_region
        _
      $region16: #{hrnet_naive_concat_forward.3} parent=11 // pred_fallthru
        _
      // Predicated region
      $region17: #{hrnet_naive_concat_forward.3} parent=11 // pred_check
        %p143 = pneg %p78
      $region18: #{hrnet_naive_concat_forward.3} parent=11 // pred_check_branch
        %145 = sbr.rel (%p143) target = $region20
      $region19: #{hrnet_naive_concat_forward.3} parent=11 // pred_region
        _
      $region20: #{hrnet_naive_concat_forward.3} parent=11 // pred_fallthru
        _
      // Predicated region
      $region21: #{hrnet_naive_concat_forward.3} parent=11 // pred_check
        %p146 = pneg %p99
      $region22: #{hrnet_naive_concat_forward.3} parent=11 // pred_check_branch
        %148 = sbr.rel (%p146) target = $region24
      $region23: #{hrnet_naive_concat_forward.3} parent=11 // pred_region
        _
      $region24: #{hrnet_naive_concat_forward.3} parent=11 // pred_fallthru
        _
    $region12: #{hrnet_naive_concat_forward.3} parent=5 // pred_fallthru
      _
    %p149 = scmp.lt.s32.totalorder %s10, 2
    // Predicated region
    $region25: #{hrnet_naive_concat_forward.3} parent=5 // pred_check
      %p150 = pneg %p149
    $region26: #{hrnet_naive_concat_forward.3} parent=5 // pred_check_branch
      %152 = sbr.rel (%p150) target = $region28
    $region27: #{hrnet_naive_concat_forward.3} parent=5 // pred_region
      // Predicated region
      $region29: #{hrnet_naive_concat_forward.3} parent=27 // pred_check
        %p153 = pneg %p30
      $region30: #{hrnet_naive_concat_forward.3} parent=27 // pred_check_branch
        %155 = sbr.rel (%p153) target = $region32
      $region31: #{hrnet_naive_concat_forward.3} parent=27 // pred_region
        %s156 = smul.u32 8, %s10
        %p157 = scmp.lt.s32.totalorder %s156, 15
        %s158 = scalar_select %p157, %s156, 15
        %s159 = smul.addr %s158, 6
        %s160 = smul.addr %s159, 4
        %s161 = scalar_lea.vmem %s0, %s160
        %s162 = smul.u32 8, %s10
      $region32: #{hrnet_naive_concat_forward.3} parent=27 // pred_fallthru
        _
    $region28: #{hrnet_naive_concat_forward.3} parent=5 // pred_fallthru
      _
    %p163 = scmp.le.s32.totalorder 1, %s10
    %p164 = scmp.lt.s32.totalorder %s10, 3
    %p165 = pnand %p163, %p164
    %p166 = pneg %p165
    // Predicated region
    $region33: #{hrnet_naive_concat_forward.3} parent=5 // pred_check
      _
    $region34: #{hrnet_naive_concat_forward.3} parent=5 // pred_check_branch
      %168 = sbr.rel (%p165) target = $region36
    $region35: #{hrnet_naive_concat_forward.3} parent=5 // pred_region
      %s169 = ssub.s32 %s10, 1
      %s170 = smul.u32 8, %s15
      %p171 = scmp.lt.s32.totalorder %s170, 15
      %s172 = scalar_select %p171, %s170, 15
      %s173 = smul.addr %s172, 6
      %s174 = smul.addr %s173, 4
      %s175 = scalar_lea.vmem %s0, %s174
      %p176 = pneg %p36
      %p177 = pneg %p33
      %p178 = pneg %p57
      %p179 = pneg %p54
      %p180 = pneg %p78
      %p181 = pneg %p75
      %p182 = pneg %p99
      %p183 = pneg %p96
      %p184 = pneg %p125
      %p185 = pneg %p122
      %s186 = smul.u32 8, %s15
      %p187 = scmp.lt.s32.totalorder %s186, 15
      %s188 = scalar_select %p187, %s186, 15
      %s189 = smul.addr %s188, 4
      %s190 = scalar_lea.vmem %s4, %s189
      %s191 = smul.u32 8, %s15
      %p192 = scmp.lt.s32.totalorder %s191, 15
      %s193 = scalar_select %p192, %s191, 15
      %s194 = smul.addr %s193, 6
      %s195 = smul.addr %s194, 4
      %s196 = scalar_lea.vmem %s0, %s195
      %s197 = smul.u32 8, %s15
      %s198 = smul.u32 8, %s15
      %p199 = scmp.lt.s32.totalorder %s198, 15
      %s200 = scalar_select %p199, %s198, 15
      %s201 = smul.addr %s200, 4
      %s202 = scalar_lea.vmem %s4, %s201
      %s203 = smul.u32 8, %s15
      %v205 = vld [vmem:[%s196] sm:$0xff]
      %v206 = vld [vmem:[%s196 + $0x8] sm:$0xff]
      %v207 = vld [vmem:[%s196 + $0x10] sm:$0xff]
      %v208 = vld [vmem:[%s196 + $0x18] sm:$0xff]
      %v209 = vld [vmem:[%s196 + $0x20] sm:$0xff]
      %v210 = vld [vmem:[%s196 + $0x28] sm:$0xff]
      %v211 = vld [vmem:[%s196 + $0x30] sm:$0xff]
      %v212 = vld [vmem:[%s196 + $0x38] sm:$0xff]
      %v213 = vld [vmem:[%s196 + $0x40] sm:$0xff]
      %v214 = vld [vmem:[%s196 + $0x48] sm:$0xff]
      %v215 = vld [vmem:[%s196 + $0x50] sm:$0xff]
      %v216 = vld [vmem:[%s196 + $0x58] sm:$0xff]
      %v217 = vld [vmem:[%s196 + $0x60] sm:$0xff]
      %v218 = vld [vmem:[%s196 + $0x68] sm:$0xff]
      %v219 = vld [vmem:[%s196 + $0x70] sm:$0xff]
      %v220 = vld [vmem:[%s196 + $0x78] sm:$0xff]
      %v221 = vld [vmem:[%s196 + $0x80] sm:$0xff]
      %v222 = vld [vmem:[%s196 + $0x88] sm:$0xff]
      %v223 = vld [vmem:[%s196 + $0x90] sm:$0xff]
      %v224 = vld [vmem:[%s196 + $0x98] sm:$0xff]
      %v225 = vld [vmem:[%s196 + $0xa0] sm:$0xff]
      %v226 = vld [vmem:[%s196 + $0xa8] sm:$0xff]
      %v227 = vld [vmem:[%s196 + $0xb0] sm:$0xff]
      %v228 = vld [vmem:[%s196 + $0xb8] sm:$0xff]
      %v229 = vld [vmem:[%s1] sm:$0xff]
      %v230 = vld [vmem:[%s1 + $0x8] sm:$0xff]
      %v231 = vld [vmem:[%s1 + $0x10] sm:$0xff]
      %v232 = vld [vmem:[%s1 + $0x18] sm:$0xff]
      %v233 = vld [vmem:[%s1 + $0x20] sm:$0xff]
      %v234 = vld [vmem:[%s1 + $0x28] sm:$0xff]
      %v235 = vld [vmem:[%s1 + $0x30] sm:$0xff]
      %v236 = vld [vmem:[%s1 + $0x38] sm:$0xff]
      %v237 = vld [vmem:[%s1 + $0x40] sm:$0xff]
      %v238 = vld [vmem:[%s1 + $0x48] sm:$0xff]
      %v239 = vld [vmem:[%s1 + $0x50] sm:$0xff]
      %v240 = vld [vmem:[%s1 + $0x58] sm:$0xff]
      %v241 = vld [vmem:[%s1 + $0x60] sm:$0xff]
      %v242 = vld [vmem:[%s1 + $0x68] sm:$0xff]
      %v243 = vld [vmem:[%s1 + $0x70] sm:$0xff]
      %v244 = vld [vmem:[%s1 + $0x78] sm:$0xff]
      %v245 = vld [vmem:[%s1 + $0x80] sm:$0xff]
      %v246 = vld [vmem:[%s1 + $0x88] sm:$0xff]
      %v247 = vld [vmem:[%s1 + $0x90] sm:$0xff]
      %v248 = vld [vmem:[%s1 + $0x98] sm:$0xff]
      %v249 = vld [vmem:[%s1 + $0xa0] sm:$0xff]
      %v250 = vld [vmem:[%s1 + $0xa8] sm:$0xff]
      %v251 = vld [vmem:[%s1 + $0xb0] sm:$0xff]
      %v252 = vld [vmem:[%s1 + $0xb8] sm:$0xff]
      %v253 = vld [vmem:[%s1 + $0xc0] sm:$0xff]
      %v254 = vld [vmem:[%s1 + $0xc8] sm:$0xff]
      %v255 = vld [vmem:[%s1 + $0xd0] sm:$0xff]
      %v256 = vld [vmem:[%s1 + $0xd8] sm:$0xff]
      %v257 = vld [vmem:[%s1 + $0xe0] sm:$0xff]
      %v258 = vld [vmem:[%s1 + $0xe8] sm:$0xff]
      %v259 = vld [vmem:[%s1 + $0xf0] sm:$0xff]
      %v260 = vld [vmem:[%s1 + $0xf8] sm:$0xff]
      %v261 = vld [vmem:[%s1 + $0x100] sm:$0xff]
      %v262 = vld [vmem:[%s1 + $0x108] sm:$0xff]
      %v263 = vld [vmem:[%s1 + $0x110] sm:$0xff]
      %v264 = vld [vmem:[%s1 + $0x118] sm:$0xff]
      %v265 = vld [vmem:[%s1 + $0x120] sm:$0xff]
      %v266 = vld [vmem:[%s1 + $0x128] sm:$0xff]
      %v267 = vld [vmem:[%s1 + $0x130] sm:$0xff]
      %v268 = vld [vmem:[%s1 + $0x138] sm:$0xff]
      %v269 = vld [vmem:[%s1 + $0x140] sm:$0xff]
      %v270 = vld [vmem:[%s1 + $0x148] sm:$0xff]
      %v271 = vld [vmem:[%s1 + $0x150] sm:$0xff]
      %v272 = vld [vmem:[%s1 + $0x158] sm:$0xff]
      %v273 = vld [vmem:[%s1 + $0x160] sm:$0xff]
      %v274 = vld [vmem:[%s1 + $0x168] sm:$0xff]
      %v275 = vld [vmem:[%s1 + $0x170] sm:$0xff]
      %v276 = vld [vmem:[%s1 + $0x178] sm:$0xff]
      %v277 = vld [vmem:[%s1 + $0x180] sm:$0xff]
      %v278 = vld [vmem:[%s1 + $0x188] sm:$0xff]
      %v279 = vld [vmem:[%s1 + $0x190] sm:$0xff]
      %v280 = vld [vmem:[%s1 + $0x198] sm:$0xff]
      %v281 = vld [vmem:[%s1 + $0x1a0] sm:$0xff]
      %v282 = vld [vmem:[%s1 + $0x1a8] sm:$0xff]
      %v283 = vld [vmem:[%s1 + $0x1b0] sm:$0xff]
      %v284 = vld [vmem:[%s1 + $0x1b8] sm:$0xff]
      %v285 = vld [vmem:[%s1 + $0x1c0] sm:$0xff]
      %v286 = vld [vmem:[%s1 + $0x1c8] sm:$0xff]
      %v287 = vld [vmem:[%s1 + $0x1d0] sm:$0xff]
      %v288 = vld [vmem:[%s1 + $0x1d8] sm:$0xff]
      %v289 = vld [vmem:[%s1 + $0x1e0] sm:$0xff]
      %v290 = vld [vmem:[%s1 + $0x1e8] sm:$0xff]
      %v291 = vld [vmem:[%s1 + $0x1f0] sm:$0xff]
      %v292 = vld [vmem:[%s1 + $0x1f8] sm:$0xff]
      %v293 = vld [vmem:[%s1 + $0x200] sm:$0xff]
      %v294 = vld [vmem:[%s1 + $0x208] sm:$0xff]
      %v295 = vld [vmem:[%s1 + $0x210] sm:$0xff]
      %v296 = vld [vmem:[%s1 + $0x218] sm:$0xff]
      %v297 = vld [vmem:[%s1 + $0x220] sm:$0xff]
      %v298 = vld [vmem:[%s1 + $0x228] sm:$0xff]
      %v299 = vld [vmem:[%s1 + $0x230] sm:$0xff]
      %v300 = vld [vmem:[%s1 + $0x238] sm:$0xff]
      %v301 = vld [vmem:[%s1 + $0x240] sm:$0xff]
      %v302 = vld [vmem:[%s1 + $0x248] sm:$0xff]
      %v303 = vld [vmem:[%s1 + $0x250] sm:$0xff]
      %v304 = vld [vmem:[%s1 + $0x258] sm:$0xff]
      %v305 = vld [vmem:[%s1 + $0x260] sm:$0xff]
      %v306 = vld [vmem:[%s1 + $0x268] sm:$0xff]
      %v307 = vld [vmem:[%s1 + $0x270] sm:$0xff]
      %v308 = vld [vmem:[%s1 + $0x278] sm:$0xff]
      %v309 = vld [vmem:[%s1 + $0x280] sm:$0xff]
      %v310 = vld [vmem:[%s1 + $0x288] sm:$0xff]
      %v311 = vld [vmem:[%s1 + $0x290] sm:$0xff]
      %v312 = vld [vmem:[%s1 + $0x298] sm:$0xff]
      %v313 = vld [vmem:[%s1 + $0x2a0] sm:$0xff]
      %v314 = vld [vmem:[%s1 + $0x2a8] sm:$0xff]
      %v315 = vld [vmem:[%s1 + $0x2b0] sm:$0xff]
      %v316 = vld [vmem:[%s1 + $0x2b8] sm:$0xff]
      %v317 = vld [vmem:[%s1 + $0x2c0] sm:$0xff]
      %v318 = vld [vmem:[%s1 + $0x2c8] sm:$0xff]
      %v319 = vld [vmem:[%s2] sm:$0x3]
      %v321 = vlaneseq
      %v322 = vshrl.u32 %v321, 7
      %v323 = vsub.s32 0, %v322
      %v324 = vrot.slane %v319, %v323
      %v325 = vlaneseq
      %v326 = vshrl.u32 %v325, 7
      %v327 = vsub.s32 1, %v326
      %v328 = vrot.slane %v319, %v327
      %v355 = vunpack.c.l.b16 %v205
      %v356 = vunpack.c.h.b16 %v205
      %v357 = vunpack.c.l.b16 %v206
      %v358 = vunpack.c.h.b16 %v206
      %v359 = vunpack.c.l.b16 %v207
      %v360 = vunpack.c.h.b16 %v207
      %v361 = vunpack.c.l.b16 %v208
      %v362 = vunpack.c.h.b16 %v208
      %v363 = vunpack.c.l.b16 %v209
      %v364 = vunpack.c.h.b16 %v209
      %v365 = vunpack.c.l.b16 %v210
      %v366 = vunpack.c.h.b16 %v210
      %v367 = vunpack.c.l.b16 %v211
      %v368 = vunpack.c.h.b16 %v211
      %v369 = vunpack.c.l.b16 %v212
      %v370 = vunpack.c.h.b16 %v212
      %v371 = vunpack.c.l.b16 %v213
      %v372 = vunpack.c.h.b16 %v213
      %v373 = vunpack.c.l.b16 %v214
      %v374 = vunpack.c.h.b16 %v214
      %v375 = vunpack.c.l.b16 %v215
      %v376 = vunpack.c.h.b16 %v215
      %v377 = vunpack.c.l.b16 %v216
      %v378 = vunpack.c.h.b16 %v216
      %v379 = vunpack.c.l.b16 %v217
      %v380 = vunpack.c.h.b16 %v217
      %v381 = vunpack.c.l.b16 %v218
      %v382 = vunpack.c.h.b16 %v218
      %v383 = vunpack.c.l.b16 %v219
      %v384 = vunpack.c.h.b16 %v219
      %v385 = vunpack.c.l.b16 %v220
      %v386 = vunpack.c.h.b16 %v220
      %v387 = vunpack.c.l.b16 %v221
      %v388 = vunpack.c.h.b16 %v221
      %v389 = vunpack.c.l.b16 %v222
      %v390 = vunpack.c.h.b16 %v222
      %v391 = vunpack.c.l.b16 %v223
      %v392 = vunpack.c.h.b16 %v223
      %v393 = vunpack.c.l.b16 %v224
      %v394 = vunpack.c.h.b16 %v224
      %v395 = vunpack.c.l.b16 %v225
      %v396 = vunpack.c.h.b16 %v225
      %v397 = vunpack.c.l.b16 %v226
      %v398 = vunpack.c.h.b16 %v226
      %v399 = vunpack.c.l.b16 %v227
      %v400 = vunpack.c.h.b16 %v227
      %v401 = vunpack.c.l.b16 %v228
      %v402 = vunpack.c.h.b16 %v228
      %v403 = vpack.c.b16 %v361, %v355
      %v404 = vpack.c.b16 %v362, %v356
      %v405 = vpack.c.b16 %v363, %v357
      %v406 = vpack.c.b16 %v364, %v358
      %v407 = vpack.c.b16 %v365, %v359
      %v408 = vpack.c.b16 %v366, %v360
      %v409 = vpack.c.b16 %v373, %v367
      %v410 = vpack.c.b16 %v374, %v368
      %v411 = vpack.c.b16 %v375, %v369
      %v412 = vpack.c.b16 %v376, %v370
      %v413 = vpack.c.b16 %v377, %v371
      %v414 = vpack.c.b16 %v378, %v372
      %v415 = vpack.c.b16 %v385, %v379
      %v416 = vpack.c.b16 %v386, %v380
      %v417 = vpack.c.b16 %v387, %v381
      %v418 = vpack.c.b16 %v388, %v382
      %v419 = vpack.c.b16 %v389, %v383
      %v420 = vpack.c.b16 %v390, %v384
      %v421 = vpack.c.b16 %v397, %v391
      %v422 = vpack.c.b16 %v398, %v392
      %v423 = vpack.c.b16 %v399, %v393
      %v424 = vpack.c.b16 %v400, %v394
      %v425 = vpack.c.b16 %v401, %v395
      %v426 = vpack.c.b16 %v402, %v396
      %v537 = vunpack.c.l.b16 %v229
      %v538 = vunpack.c.h.b16 %v229
      %v539 = vunpack.c.l.b16 %v230
      %v540 = vunpack.c.h.b16 %v230
      %v541 = vunpack.c.l.b16 %v231
      %v542 = vunpack.c.h.b16 %v231
      %v543 = vunpack.c.l.b16 %v232
      %v544 = vunpack.c.h.b16 %v232
      %v545 = vunpack.c.l.b16 %v233
      %v546 = vunpack.c.h.b16 %v233
      %v547 = vunpack.c.l.b16 %v234
      %v548 = vunpack.c.h.b16 %v234
      %v549 = vunpack.c.l.b16 %v235
      %v550 = vunpack.c.h.b16 %v235
      %v551 = vunpack.c.l.b16 %v236
      %v552 = vunpack.c.h.b16 %v236
      %v553 = vunpack.c.l.b16 %v237
      %v554 = vunpack.c.h.b16 %v237
      %v555 = vunpack.c.l.b16 %v238
      %v556 = vunpack.c.h.b16 %v238
      %v557 = vunpack.c.l.b16 %v239
      %v558 = vunpack.c.h.b16 %v239
      %v559 = vunpack.c.l.b16 %v240
      %v560 = vunpack.c.h.b16 %v240
      %v561 = vunpack.c.l.b16 %v241
      %v562 = vunpack.c.h.b16 %v241
      %v563 = vunpack.c.l.b16 %v242
      %v564 = vunpack.c.h.b16 %v242
      %v565 = vunpack.c.l.b16 %v243
      %v566 = vunpack.c.h.b16 %v243
      %v567 = vunpack.c.l.b16 %v244
      %v568 = vunpack.c.h.b16 %v244
      %v569 = vunpack.c.l.b16 %v245
      %v570 = vunpack.c.h.b16 %v245
      %v571 = vunpack.c.l.b16 %v246
      %v572 = vunpack.c.h.b16 %v246
      %v573 = vunpack.c.l.b16 %v247
      %v574 = vunpack.c.h.b16 %v247
      %v575 = vunpack.c.l.b16 %v248
      %v576 = vunpack.c.h.b16 %v248
      %v577 = vunpack.c.l.b16 %v249
      %v578 = vunpack.c.h.b16 %v249
      %v579 = vunpack.c.l.b16 %v250
      %v580 = vunpack.c.h.b16 %v250
      %v581 = vunpack.c.l.b16 %v251
      %v582 = vunpack.c.h.b16 %v251
      %v583 = vunpack.c.l.b16 %v252
      %v584 = vunpack.c.h.b16 %v252
      %v585 = vunpack.c.l.b16 %v253
      %v586 = vunpack.c.h.b16 %v253
      %v587 = vunpack.c.l.b16 %v254
      %v588 = vunpack.c.h.b16 %v254
      %v589 = vunpack.c.l.b16 %v255
      %v590 = vunpack.c.h.b16 %v255
      %v591 = vunpack.c.l.b16 %v256
      %v592 = vunpack.c.h.b16 %v256
      %v593 = vunpack.c.l.b16 %v257
      %v594 = vunpack.c.h.b16 %v257
      %v595 = vunpack.c.l.b16 %v258
      %v596 = vunpack.c.h.b16 %v258
      %v597 = vunpack.c.l.b16 %v259
      %v598 = vunpack.c.h.b16 %v259
      %v599 = vunpack.c.l.b16 %v260
      %v600 = vunpack.c.h.b16 %v260
      %v601 = vunpack.c.l.b16 %v261
      %v602 = vunpack.c.h.b16 %v261
      %v603 = vunpack.c.l.b16 %v262
      %v604 = vunpack.c.h.b16 %v262
      %v605 = vunpack.c.l.b16 %v263
      %v606 = vunpack.c.h.b16 %v263
      %v607 = vunpack.c.l.b16 %v264
      %v608 = vunpack.c.h.b16 %v264
      %v609 = vunpack.c.l.b16 %v265
      %v610 = vunpack.c.h.b16 %v265
      %v611 = vunpack.c.l.b16 %v266
      %v612 = vunpack.c.h.b16 %v266
      %v613 = vunpack.c.l.b16 %v267
      %v614 = vunpack.c.h.b16 %v267
      %v615 = vunpack.c.l.b16 %v268
      %v616 = vunpack.c.h.b16 %v268
      %v617 = vunpack.c.l.b16 %v269
      %v618 = vunpack.c.h.b16 %v269
      %v619 = vunpack.c.l.b16 %v270
      %v620 = vunpack.c.h.b16 %v270
      %v621 = vunpack.c.l.b16 %v271
      %v622 = vunpack.c.h.b16 %v271
      %v623 = vunpack.c.l.b16 %v272
      %v624 = vunpack.c.h.b16 %v272
      %v625 = vunpack.c.l.b16 %v273
      %v626 = vunpack.c.h.b16 %v273
      %v627 = vunpack.c.l.b16 %v274
      %v628 = vunpack.c.h.b16 %v274
      %v629 = vunpack.c.l.b16 %v275
      %v630 = vunpack.c.h.b16 %v275
      %v631 = vunpack.c.l.b16 %v276
      %v632 = vunpack.c.h.b16 %v276
      %v633 = vunpack.c.l.b16 %v277
      %v634 = vunpack.c.h.b16 %v277
      %v635 = vunpack.c.l.b16 %v278
      %v636 = vunpack.c.h.b16 %v278
      %v637 = vunpack.c.l.b16 %v279
      %v638 = vunpack.c.h.b16 %v279
      %v639 = vunpack.c.l.b16 %v280
      %v640 = vunpack.c.h.b16 %v280
      %v641 = vunpack.c.l.b16 %v281
      %v642 = vunpack.c.h.b16 %v281
      %v643 = vunpack.c.l.b16 %v282
      %v644 = vunpack.c.h.b16 %v282
      %v645 = vunpack.c.l.b16 %v283
      %v646 = vunpack.c.h.b16 %v283
      %v647 = vunpack.c.l.b16 %v284
      %v648 = vunpack.c.h.b16 %v284
      %v649 = vunpack.c.l.b16 %v285
      %v650 = vunpack.c.h.b16 %v285
      %v651 = vunpack.c.l.b16 %v286
      %v652 = vunpack.c.h.b16 %v286
      %v653 = vunpack.c.l.b16 %v287
      %v654 = vunpack.c.h.b16 %v287
      %v655 = vunpack.c.l.b16 %v288
      %v656 = vunpack.c.h.b16 %v288
      %v657 = vunpack.c.l.b16 %v289
      %v658 = vunpack.c.h.b16 %v289
      %v659 = vunpack.c.l.b16 %v290
      %v660 = vunpack.c.h.b16 %v290
      %v661 = vunpack.c.l.b16 %v291
      %v662 = vunpack.c.h.b16 %v291
      %v663 = vunpack.c.l.b16 %v292
      %v664 = vunpack.c.h.b16 %v292
      %v665 = vunpack.c.l.b16 %v293
      %v666 = vunpack.c.h.b16 %v293
      %v667 = vunpack.c.l.b16 %v294
      %v668 = vunpack.c.h.b16 %v294
      %v669 = vunpack.c.l.b16 %v295
      %v670 = vunpack.c.h.b16 %v295
      %v671 = vunpack.c.l.b16 %v296
      %v672 = vunpack.c.h.b16 %v296
      %v673 = vunpack.c.l.b16 %v297
      %v674 = vunpack.c.h.b16 %v297
      %v675 = vunpack.c.l.b16 %v298
      %v676 = vunpack.c.h.b16 %v298
      %v677 = vunpack.c.l.b16 %v299
      %v678 = vunpack.c.h.b16 %v299
      %v679 = vunpack.c.l.b16 %v300
      %v680 = vunpack.c.h.b16 %v300
      %v681 = vunpack.c.l.b16 %v301
      %v682 = vunpack.c.h.b16 %v301
      %v683 = vunpack.c.l.b16 %v302
      %v684 = vunpack.c.h.b16 %v302
      %v685 = vunpack.c.l.b16 %v303
      %v686 = vunpack.c.h.b16 %v303
      %v687 = vunpack.c.l.b16 %v304
      %v688 = vunpack.c.h.b16 %v304
      %v689 = vunpack.c.l.b16 %v305
      %v690 = vunpack.c.h.b16 %v305
      %v691 = vunpack.c.l.b16 %v306
      %v692 = vunpack.c.h.b16 %v306
      %v693 = vunpack.c.l.b16 %v307
      %v694 = vunpack.c.h.b16 %v307
      %v695 = vunpack.c.l.b16 %v308
      %v696 = vunpack.c.h.b16 %v308
      %v697 = vunpack.c.l.b16 %v309
      %v698 = vunpack.c.h.b16 %v309
      %v699 = vunpack.c.l.b16 %v310
      %v700 = vunpack.c.h.b16 %v310
      %v701 = vunpack.c.l.b16 %v311
      %v702 = vunpack.c.h.b16 %v311
      %v703 = vunpack.c.l.b16 %v312
      %v704 = vunpack.c.h.b16 %v312
      %v705 = vunpack.c.l.b16 %v313
      %v706 = vunpack.c.h.b16 %v313
      %v707 = vunpack.c.l.b16 %v314
      %v708 = vunpack.c.h.b16 %v314
      %v709 = vunpack.c.l.b16 %v315
      %v710 = vunpack.c.h.b16 %v315
      %v711 = vunpack.c.l.b16 %v316
      %v712 = vunpack.c.h.b16 %v316
      %v713 = vunpack.c.l.b16 %v317
      %v714 = vunpack.c.h.b16 %v317
      %v715 = vunpack.c.l.b16 %v318
      %v716 = vunpack.c.h.b16 %v318
      %v717 = vpack.c.b16 %v539, %v537
      %v718 = vpack.c.b16 %v540, %v538
      %v719 = vpack.c.b16 %v543, %v541
      %v720 = vpack.c.b16 %v544, %v542
      %v721 = vpack.c.b16 %v547, %v545
      %v722 = vpack.c.b16 %v548, %v546
      %v723 = vpack.c.b16 %v551, %v549
      %v724 = vpack.c.b16 %v552, %v550
      %v725 = vpack.c.b16 %v555, %v553
      %v726 = vpack.c.b16 %v556, %v554
      %v727 = vpack.c.b16 %v559, %v557
      %v728 = vpack.c.b16 %v560, %v558
      %v729 = vpack.c.b16 %v563, %v561
      %v730 = vpack.c.b16 %v564, %v562
      %v731 = vpack.c.b16 %v567, %v565
      %v732 = vpack.c.b16 %v568, %v566
      %v733 = vpack.c.b16 %v571, %v569
      %v734 = vpack.c.b16 %v572, %v570
      %v735 = vpack.c.b16 %v575, %v573
      %v736 = vpack.c.b16 %v576, %v574
      %v737 = vpack.c.b16 %v579, %v577
      %v738 = vpack.c.b16 %v580, %v578
      %v739 = vpack.c.b16 %v583, %v581
      %v740 = vpack.c.b16 %v584, %v582
      %v741 = vpack.c.b16 %v587, %v585
      %v742 = vpack.c.b16 %v588, %v586
      %v743 = vpack.c.b16 %v591, %v589
      %v744 = vpack.c.b16 %v592, %v590
      %v745 = vpack.c.b16 %v595, %v593
      %v746 = vpack.c.b16 %v596, %v594
      %v747 = vpack.c.b16 %v599, %v597
      %v748 = vpack.c.b16 %v600, %v598
      %v749 = vpack.c.b16 %v603, %v601
      %v750 = vpack.c.b16 %v604, %v602
      %v751 = vpack.c.b16 %v607, %v605
      %v752 = vpack.c.b16 %v608, %v606
      %v753 = vpack.c.b16 %v611, %v609
      %v754 = vpack.c.b16 %v612, %v610
      %v755 = vpack.c.b16 %v615, %v613
      %v756 = vpack.c.b16 %v616, %v614
      %v757 = vpack.c.b16 %v619, %v617
      %v758 = vpack.c.b16 %v620, %v618
      %v759 = vpack.c.b16 %v623, %v621
      %v760 = vpack.c.b16 %v624, %v622
      %v761 = vpack.c.b16 %v627, %v625
      %v762 = vpack.c.b16 %v628, %v626
      %v763 = vpack.c.b16 %v631, %v629
      %v764 = vpack.c.b16 %v632, %v630
      %v765 = vpack.c.b16 %v635, %v633
      %v766 = vpack.c.b16 %v636, %v634
      %v767 = vpack.c.b16 %v639, %v637
      %v768 = vpack.c.b16 %v640, %v638
      %v769 = vpack.c.b16 %v643, %v641
      %v770 = vpack.c.b16 %v644, %v642
      %v771 = vpack.c.b16 %v647, %v645
      %v772 = vpack.c.b16 %v648, %v646
      %v773 = vpack.c.b16 %v651, %v649
      %v774 = vpack.c.b16 %v652, %v650
      %v775 = vpack.c.b16 %v655, %v653
      %v776 = vpack.c.b16 %v656, %v654
      %v777 = vpack.c.b16 %v659, %v657
      %v778 = vpack.c.b16 %v660, %v658
      %v779 = vpack.c.b16 %v663, %v661
      %v780 = vpack.c.b16 %v664, %v662
      %v781 = vpack.c.b16 %v667, %v665
      %v782 = vpack.c.b16 %v668, %v666
      %v783 = vpack.c.b16 %v671, %v669
      %v784 = vpack.c.b16 %v672, %v670
      %v785 = vpack.c.b16 %v675, %v673
      %v786 = vpack.c.b16 %v676, %v674
      %v787 = vpack.c.b16 %v679, %v677
      %v788 = vpack.c.b16 %v680, %v678
      %v789 = vpack.c.b16 %v683, %v681
      %v790 = vpack.c.b16 %v684, %v682
      %v791 = vpack.c.b16 %v687, %v685
      %v792 = vpack.c.b16 %v688, %v686
      %v793 = vpack.c.b16 %v691, %v689
      %v794 = vpack.c.b16 %v692, %v690
      %v795 = vpack.c.b16 %v695, %v693
      %v796 = vpack.c.b16 %v696, %v694
      %v797 = vpack.c.b16 %v699, %v697
      %v798 = vpack.c.b16 %v700, %v698
      %v799 = vpack.c.b16 %v703, %v701
      %v800 = vpack.c.b16 %v704, %v702
      %v801 = vpack.c.b16 %v707, %v705
      %v802 = vpack.c.b16 %v708, %v706
      %v803 = vpack.c.b16 %v711, %v709
      %v804 = vpack.c.b16 %v712, %v710
      %v805 = vpack.c.b16 %v715, %v713
      %v806 = vpack.c.b16 %v716, %v714
      %vm897 = vcmask 654336
      %v899 = vsel %vm897, %v408, 0
      %v902 = vsel %vm897, %v414, 0
      %v905 = vsel %vm897, %v420, 0
      %v908 = vsel %vm897, %v426, 0
      %910 = vmatprep.subr.bf16.mxu0 %v718
      %911 = vmatpush1.bf16.msra.mxu0 %v717
      %912 = vmatprep.subr.bf16.mxu0 %v720
      %913 = vmatpush1.bf16.msra.mxu0 %v719
      %914 = vmatprep.subr.bf16.mxu0 %v722
      %915 = vmatpush1.bf16.msra.mxu0 %v721
      %916 = vmatprep.subr.bf16.mxu0 %v724
      %917 = vmatpush1.bf16.msra.mxu0 %v723
      %918 = vmatprep.subr.bf16.mxu0 %v726
      %919 = vmatpush1.bf16.msra.mxu0 %v725
      %920 = vmatprep.subr.bf16.mxu0 %v728
      %921 = vmatpush1.bf16.msra.mxu0 %v727
      %922 = vmatprep.subr.bf16.mxu0 %v730
      %923 = vmatpush1.bf16.msra.mxu0 %v729
      %924 = vmatprep.subr.bf16.mxu0 %v732
      %925 = vmatpush1.bf16.msra.mxu0 %v731
      %926 = vmatprep.subr.bf16.mxu0 %v734
      %927 = vmatpush1.bf16.msra.mxu0 %v733
      %928 = vmatprep.subr.bf16.mxu0 %v736
      %929 = vmatpush1.bf16.msra.mxu0 %v735
      %930 = vmatprep.subr.bf16.mxu0 %v738
      %931 = vmatpush1.bf16.msra.mxu0 %v737
      %932 = vmatprep.subr.bf16.mxu0 %v740
      %933 = vmatpush1.bf16.msra.mxu0 %v739
      %934 = vmatprep.subr.bf16.mxu0 %v742
      %935 = vmatpush1.bf16.msra.mxu0 %v741
      %936 = vmatprep.subr.bf16.mxu0 %v744
      %937 = vmatpush1.bf16.msra.mxu0 %v743
      %938 = vmatprep.subr.bf16.mxu0 %v746
      %939 = vmatpush1.bf16.msra.mxu0 %v745
      %940 = vmatprep.subr.bf16.mxu0 %v748
      %941 = vmatpush1.bf16.msra.mxu0 %v747
      %942 = vmatprep.mubr.bf16.mxu0 %v404
      %943 = vmatmul.mubr.bf16.gmra.mrb[0].mxu0 %v403
      %v944 = vpop.f32.mrb[0].mxu0
      %v945 = vadd.f32 %v324, %v944
      %v946 = vpop.f32.mrb[0].mxu0
      %v947 = vadd.f32 %v328, %v946
      %v948 = vpop.f32.mrb[0].mxu0
      %v949 = vadd.f32 %v324, %v948
      %v950 = vpop.f32.mrb[0].mxu0
      %v951 = vadd.f32 %v328, %v950
      %952 = vmatprep.mubr.bf16.mxu0 %v410
      %953 = vmatmul.mubr.bf16.gmra.mrb[0].mxu0 %v409
      %v954 = vpop.f32.mrb[0].mxu0
      %v955 = vadd.f32 %v324, %v954
      %v956 = vpop.f32.mrb[0].mxu0
      %v957 = vadd.f32 %v328, %v956
      %v958 = vpop.f32.mrb[0].mxu0
      %v959 = vadd.f32 %v324, %v958
      %v960 = vpop.f32.mrb[0].mxu0
      %v961 = vadd.f32 %v328, %v960
      %962 = vmatprep.mubr.bf16.mxu0 %v416
      %963 = vmatmul.mubr.bf16.gmra.mrb[0].mxu0 %v415
      %v964 = vpop.f32.mrb[0].mxu0
      %v965 = vadd.f32 %v324, %v964
      %v966 = vpop.f32.mrb[0].mxu0
      %v967 = vadd.f32 %v328, %v966
      %v968 = vpop.f32.mrb[0].mxu0
      %v969 = vadd.f32 %v324, %v968
      %v970 = vpop.f32.mrb[0].mxu0
      %v971 = vadd.f32 %v328, %v970
      %972 = vmatprep.mubr.bf16.mxu0 %v422
      %973 = vmatmul.mubr.bf16.gmra.mrb[0].mxu0 %v421
      %v974 = vpop.f32.mrb[0].mxu0
      %v975 = vadd.f32 %v324, %v974
      %v976 = vpop.f32.mrb[0].mxu0
      %v977 = vadd.f32 %v328, %v976
      %v978 = vpop.f32.mrb[0].mxu0
      %v979 = vadd.f32 %v324, %v978
      %v980 = vpop.f32.mrb[0].mxu0
      %v981 = vadd.f32 %v328, %v980
      %982 = vdwg.mxu0
      %983 = vmatprep.subr.bf16.mxu0 %v750
      %984 = vmatpush1.bf16.msra.mxu0 %v749
      %985 = vmatprep.subr.bf16.mxu0 %v752
      %986 = vmatpush1.bf16.msra.mxu0 %v751
      %987 = vmatprep.subr.bf16.mxu0 %v754
      %988 = vmatpush1.bf16.msra.mxu0 %v753
      %989 = vmatprep.subr.bf16.mxu0 %v756
      %990 = vmatpush1.bf16.msra.mxu0 %v755
      %991 = vmatprep.subr.bf16.mxu0 %v758
      %992 = vmatpush1.bf16.msra.mxu0 %v757
      %993 = vmatprep.subr.bf16.mxu0 %v760
      %994 = vmatpush1.bf16.msra.mxu0 %v759
      %995 = vmatprep.subr.bf16.mxu0 %v762
      %996 = vmatpush1.bf16.msra.mxu0 %v761
      %997 = vmatprep.subr.bf16.mxu0 %v764
      %998 = vmatpush1.bf16.msra.mxu0 %v763
      %999 = vmatprep.subr.bf16.mxu0 %v766
      %1000 = vmatpush1.bf16.msra.mxu0 %v765
      %1001 = vmatprep.subr.bf16.mxu0 %v768
      %1002 = vmatpush1.bf16.msra.mxu0 %v767
      %1003 = vmatprep.subr.bf16.mxu0 %v770
      %1004 = vmatpush1.bf16.msra.mxu0 %v769
      %1005 = vmatprep.subr.bf16.mxu0 %v772
      %1006 = vmatpush1.bf16.msra.mxu0 %v771
      %1007 = vmatprep.subr.bf16.mxu0 %v774
      %1008 = vmatpush1.bf16.msra.mxu0 %v773
      %1009 = vmatprep.subr.bf16.mxu0 %v776
      %1010 = vmatpush1.bf16.msra.mxu0 %v775
      %1011 = vmatprep.subr.bf16.mxu0 %v778
      %1012 = vmatpush1.bf16.msra.mxu0 %v777
      %1013 = vmatprep.subr.bf16.mxu0 %v780
      %1014 = vmatpush1.bf16.msra.mxu0 %v779
      %1015 = vmatprep.mubr.bf16.mxu0 %v406
      %1016 = vmatmul.mubr.bf16.gmra.mrb[0].mxu0 %v405
      %v1017 = vpop.f32.mrb[0].mxu0
      %v1018 = vadd.f32 %v945, %v1017
      %v1019 = vpop.f32.mrb[0].mxu0
      %v1020 = vadd.f32 %v947, %v1019
      %v1021 = vpop.f32.mrb[0].mxu0
      %v1022 = vadd.f32 %v949, %v1021
      %v1023 = vpop.f32.mrb[0].mxu0
      %v1024 = vadd.f32 %v951, %v1023
      %1025 = vmatprep.mubr.bf16.mxu0 %v412
      %1026 = vmatmul.mubr.bf16.gmra.mrb[0].mxu0 %v411
      %v1027 = vpop.f32.mrb[0].mxu0
      %v1028 = vadd.f32 %v955, %v1027
      %v1029 = vpop.f32.mrb[0].mxu0
      %v1030 = vadd.f32 %v957, %v1029
      %v1031 = vpop.f32.mrb[0].mxu0
      %v1032 = vadd.f32 %v959, %v1031
      %v1033 = vpop.f32.mrb[0].mxu0
      %v1034 = vadd.f32 %v961, %v1033
      %1035 = vmatprep.mubr.bf16.mxu0 %v418
      %1036 = vmatmul.mubr.bf16.gmra.mrb[0].mxu0 %v417
      %v1037 = vpop.f32.mrb[0].mxu0
      %v1038 = vadd.f32 %v965, %v1037
      %v1039 = vpop.f32.mrb[0].mxu0
      %v1040 = vadd.f32 %v967, %v1039
      %v1041 = vpop.f32.mrb[0].mxu0
      %v1042 = vadd.f32 %v969, %v1041
      %v1043 = vpop.f32.mrb[0].mxu0
      %v1044 = vadd.f32 %v971, %v1043
      %1045 = vmatprep.mubr.bf16.mxu0 %v424
      %1046 = vmatmul.mubr.bf16.gmra.mrb[0].mxu0 %v423
      %v1047 = vpop.f32.mrb[0].mxu0
      %v1048 = vadd.f32 %v975, %v1047
      %v1049 = vpop.f32.mrb[0].mxu0
      %v1050 = vadd.f32 %v977, %v1049
      %v1051 = vpop.f32.mrb[0].mxu0
      %v1052 = vadd.f32 %v979, %v1051
      %v1053 = vpop.f32.mrb[0].mxu0
      %v1054 = vadd.f32 %v981, %v1053
      %1055 = vdwg.mxu0
      %1056 = vmatprep.subr.bf16.mxu0 %v782
      %1057 = vmatpush1.bf16.msra.mxu0 %v781
      %1058 = vmatprep.subr.bf16.mxu0 %v784
      %1059 = vmatpush1.bf16.msra.mxu0 %v783
      %1060 = vmatprep.subr.bf16.mxu0 %v786
      %1061 = vmatpush1.bf16.msra.mxu0 %v785
      %1062 = vmatprep.subr.bf16.mxu0 %v788
      %1063 = vmatpush1.bf16.msra.mxu0 %v787
      %1064 = vmatprep.subr.bf16.mxu0 %v790
      %1065 = vmatpush1.bf16.msra.mxu0 %v789
      %1066 = vmatprep.subr.bf16.mxu0 %v792
      %1067 = vmatpush1.bf16.msra.mxu0 %v791
      %1068 = vmatprep.subr.bf16.mxu0 %v794
      %1069 = vmatpush1.bf16.msra.mxu0 %v793
      %1070 = vmatprep.subr.bf16.mxu0 %v796
      %1071 = vmatpush1.bf16.msra.mxu0 %v795
      %1072 = vmatprep.subr.bf16.mxu0 %v798
      %1073 = vmatpush1.bf16.msra.mxu0 %v797
      %1074 = vmatprep.subr.bf16.mxu0 %v800
      %1075 = vmatpush1.bf16.msra.mxu0 %v799
      %1076 = vmatprep.subr.bf16.mxu0 %v802
      %1077 = vmatpush1.bf16.msra.mxu0 %v801
      %1078 = vmatprep.subr.bf16.mxu0 %v804
      %1079 = vmatpush1.bf16.msra.mxu0 %v803
      %1080 = vmatprep.subr.bf16.mxu0 %v806
      %1081 = vmatpush1.bf16.msra.mxu0 %v805
      %1082 = vmatprep.subr.bf16.mxu0 0
      %1083 = vmatpush1.bf16.msra.mxu0 0
      %1084 = vmatprep.subr.bf16.mxu0 0
      %1085 = vmatpush1.bf16.msra.mxu0 0
      %1086 = vmatprep.subr.bf16.mxu0 0
      %1087 = vmatpush1.bf16.msra.mxu0 0
      %1088 = vmatprep.mubr.bf16.mxu0 %v899
      %1089 = vmatmul.mubr.bf16.gmra.mrb[0].mxu0 %v407
      %v1090 = vpop.f32.mrb[0].mxu0
      %v1091 = vadd.f32 %v1018, %v1090
      %v1092 = vpop.f32.mrb[0].mxu0
      %v1093 = vadd.f32 %v1020, %v1092
      %v1094 = vpop.f32.mrb[0].mxu0
      %v1095 = vadd.f32 %v1022, %v1094
      %v1096 = vpop.f32.mrb[0].mxu0
      %v1097 = vadd.f32 %v1024, %v1096
      %1098 = vmatprep.mubr.bf16.mxu0 %v902
      %1099 = vmatmul.mubr.bf16.gmra.mrb[0].mxu0 %v413
      %v1100 = vpop.f32.mrb[0].mxu0
      %v1101 = vadd.f32 %v1028, %v1100
      %v1102 = vpop.f32.mrb[0].mxu0
      %v1103 = vadd.f32 %v1030, %v1102
      %v1104 = vpop.f32.mrb[0].mxu0
      %v1105 = vadd.f32 %v1032, %v1104
      %v1106 = vpop.f32.mrb[0].mxu0
      %v1107 = vadd.f32 %v1034, %v1106
      %1108 = vmatprep.mubr.bf16.mxu0 %v905
      %1109 = vmatmul.mubr.bf16.gmra.mrb[0].mxu0 %v419
      %v1110 = vpop.f32.mrb[0].mxu0
      %v1111 = vadd.f32 %v1038, %v1110
      %v1112 = vpop.f32.mrb[0].mxu0
      %v1113 = vadd.f32 %v1040, %v1112
      %v1114 = vpop.f32.mrb[0].mxu0
      %v1115 = vadd.f32 %v1042, %v1114
      %v1116 = vpop.f32.mrb[0].mxu0
      %v1117 = vadd.f32 %v1044, %v1116
      %1118 = vmatprep.mubr.bf16.mxu0 %v908
      %1119 = vmatmul.mubr.bf16.gmra.mrb[0].mxu0 %v425
      %v1120 = vpop.f32.mrb[0].mxu0
      %v1121 = vadd.f32 %v1048, %v1120
      %v1122 = vpop.f32.mrb[0].mxu0
      %v1123 = vadd.f32 %v1050, %v1122
      %v1124 = vpop.f32.mrb[0].mxu0
      %v1125 = vadd.f32 %v1052, %v1124
      %v1126 = vpop.f32.mrb[0].mxu0
      %v1127 = vadd.f32 %v1054, %v1126
      %1128 = vdwg.mxu0
      %v1129 = vmax.f32 %v1091, 0.0
      %v1130 = vmax.f32 %v1093, 0.0
      %v1131 = vmax.f32 %v1095, 0.0
      %v1132 = vmax.f32 %v1097, 0.0
      %v1133 = vmax.f32 %v1101, 0.0
      %v1134 = vmax.f32 %v1103, 0.0
      %v1135 = vmax.f32 %v1105, 0.0
      %v1136 = vmax.f32 %v1107, 0.0
      %v1137 = vmax.f32 %v1111, 0.0
      %v1138 = vmax.f32 %v1113, 0.0
      %v1139 = vmax.f32 %v1115, 0.0
      %v1140 = vmax.f32 %v1117, 0.0
      %v1141 = vmax.f32 %v1121, 0.0
      %v1142 = vmax.f32 %v1123, 0.0
      %v1143 = vmax.f32 %v1125, 0.0
      %v1144 = vmax.f32 %v1127, 0.0
      %v1145 = vpack.c.bf16 %v1131, %v1129
      %v1146 = vpack.c.bf16 %v1132, %v1130
      %v1147 = vpack.c.bf16 %v1135, %v1133
      %v1148 = vpack.c.bf16 %v1136, %v1134
      %v1149 = vpack.c.bf16 %v1139, %v1137
      %v1150 = vpack.c.bf16 %v1140, %v1138
      %v1151 = vpack.c.bf16 %v1143, %v1141
      %v1152 = vpack.c.bf16 %v1144, %v1142
      %v1153 = vld [vmem:[%s3] sm:$0xf]
      %v1154 = vld [vmem:[%s3 + $0x4] sm:$0xf]
      %v1155 = vld [vmem:[%s3 + $0x8] sm:$0xf]
      %v1156 = vld [vmem:[%s3 + $0xc] sm:$0xf]
      %v1157 = vld [vmem:[%s3 + $0x10] sm:$0xf]
      %v1158 = vld [vmem:[%s3 + $0x14] sm:$0xf]
      %v1159 = vld [vmem:[%s3 + $0x18] sm:$0xf]
      %v1160 = vld [vmem:[%s3 + $0x1c] sm:$0xf]
      %v1161 = vld [vmem:[%s3 + $0x20] sm:$0xf]
      %v1162 = vld [vmem:[%s3 + $0x24] sm:$0xf]
      %v1163 = vld [vmem:[%s3 + $0x28] sm:$0xf]
      %v1164 = vld [vmem:[%s3 + $0x2c] sm:$0xf]
      %v1165 = vld [vmem:[%s3 + $0x30] sm:$0xf]
      %v1166 = vld [vmem:[%s3 + $0x34] sm:$0xf]
      %v1167 = vld [vmem:[%s3 + $0x38] sm:$0xf]
      %v1168 = vld [vmem:[%s3 + $0x3c] sm:$0xf]
      %v1169 = vld [vmem:[%s3 + $0x40] sm:$0xf]
      %v1170 = vld [vmem:[%s3 + $0x44] sm:$0xf]
      %v1171 = vld [vmem:[%s3 + $0x48] sm:$0xf]
      %v1172 = vld [vmem:[%s3 + $0x4c] sm:$0xf]
      %v1173 = vld [vmem:[%s3 + $0x50] sm:$0xf]
      %v1174 = vld [vmem:[%s3 + $0x54] sm:$0xf]
      %v1175 = vld [vmem:[%s3 + $0x58] sm:$0xf]
      %v1176 = vld [vmem:[%s3 + $0x5c] sm:$0xf]
      %v1177 = vld [vmem:[%s3 + $0x60] sm:$0xf]
      %v1178 = vld [vmem:[%s3 + $0x64] sm:$0xf]
      %v1179 = vld [vmem:[%s3 + $0x68] sm:$0xf]
      %v1180 = vld [vmem:[%s3 + $0x6c] sm:$0xf]
      %v1181 = vld [vmem:[%s3 + $0x70] sm:$0xf]
      %v1182 = vld [vmem:[%s3 + $0x74] sm:$0xf]
      %v1183 = vld [vmem:[%s3 + $0x78] sm:$0xf]
      %v1184 = vld [vmem:[%s3 + $0x7c] sm:$0xf]
      %v1217 = vunpack.c.l.b16 %v1153
      %v1218 = vunpack.c.l.b16 %v1154
      %v1219 = vunpack.c.l.b16 %v1155
      %v1220 = vunpack.c.l.b16 %v1156
      %v1221 = vunpack.c.l.b16 %v1157
      %v1222 = vunpack.c.l.b16 %v1158
      %v1223 = vunpack.c.l.b16 %v1159
      %v1224 = vunpack.c.l.b16 %v1160
      %v1225 = vunpack.c.l.b16 %v1161
      %v1226 = vunpack.c.l.b16 %v1162
      %v1227 = vunpack.c.l.b16 %v1163
      %v1228 = vunpack.c.l.b16 %v1164
      %v1229 = vunpack.c.l.b16 %v1165
      %v1230 = vunpack.c.l.b16 %v1166
      %v1231 = vunpack.c.l.b16 %v1167
      %v1232 = vunpack.c.l.b16 %v1168
      %v1233 = vunpack.c.l.b16 %v1169
      %v1234 = vunpack.c.l.b16 %v1170
      %v1235 = vunpack.c.l.b16 %v1171
      %v1236 = vunpack.c.l.b16 %v1172
      %v1237 = vunpack.c.l.b16 %v1173
      %v1238 = vunpack.c.l.b16 %v1174
      %v1239 = vunpack.c.l.b16 %v1175
      %v1240 = vunpack.c.l.b16 %v1176
      %v1241 = vunpack.c.l.b16 %v1177
      %v1242 = vunpack.c.l.b16 %v1178
      %v1243 = vunpack.c.l.b16 %v1179
      %v1244 = vunpack.c.l.b16 %v1180
      %v1245 = vunpack.c.l.b16 %v1181
      %v1246 = vunpack.c.l.b16 %v1182
      %v1247 = vunpack.c.l.b16 %v1183
      %v1248 = vunpack.c.l.b16 %v1184
      %v1249 = vpack.c.b16 %v1218, %v1217
      %v1250 = vpack.c.b16 %v1220, %v1219
      %v1251 = vpack.c.b16 %v1222, %v1221
      %v1252 = vpack.c.b16 %v1224, %v1223
      %v1253 = vpack.c.b16 %v1226, %v1225
      %v1254 = vpack.c.b16 %v1228, %v1227
      %v1255 = vpack.c.b16 %v1230, %v1229
      %v1256 = vpack.c.b16 %v1232, %v1231
      %v1257 = vpack.c.b16 %v1234, %v1233
      %v1258 = vpack.c.b16 %v1236, %v1235
      %v1259 = vpack.c.b16 %v1238, %v1237
      %v1260 = vpack.c.b16 %v1240, %v1239
      %v1261 = vpack.c.b16 %v1242, %v1241
      %v1262 = vpack.c.b16 %v1244, %v1243
      %v1263 = vpack.c.b16 %v1246, %v1245
      %v1264 = vpack.c.b16 %v1248, %v1247
      %1281 = vmatprep.subr.bf16.mxu0 0
      %1282 = vmatpush1.bf16.msra.mxu0 %v1249
      %1283 = vmatprep.subr.bf16.mxu0 0
      %1284 = vmatpush1.bf16.msra.mxu0 %v1250
      %1285 = vmatprep.subr.bf16.mxu0 0
      %1286 = vmatpush1.bf16.msra.mxu0 %v1251
      %1287 = vmatprep.subr.bf16.mxu0 0
      %1288 = vmatpush1.bf16.msra.mxu0 %v1252
      %1289 = vmatprep.subr.bf16.mxu0 0
      %1290 = vmatpush1.bf16.msra.mxu0 %v1253
      %1291 = vmatprep.subr.bf16.mxu0 0
      %1292 = vmatpush1.bf16.msra.mxu0 %v1254
      %1293 = vmatprep.subr.bf16.mxu0 0
      %1294 = vmatpush1.bf16.msra.mxu0 %v1255
      %1295 = vmatprep.subr.bf16.mxu0 0
      %1296 = vmatpush1.bf16.msra.mxu0 %v1256
      %1297 = vmatprep.subr.bf16.mxu0 0
      %1298 = vmatpush1.bf16.msra.mxu0 %v1257
      %1299 = vmatprep.subr.bf16.mxu0 0
      %1300 = vmatpush1.bf16.msra.mxu0 %v1258
      %1301 = vmatprep.subr.bf16.mxu0 0
      %1302 = vmatpush1.bf16.msra.mxu0 %v1259
      %1303 = vmatprep.subr.bf16.mxu0 0
      %1304 = vmatpush1.bf16.msra.mxu0 %v1260
      %1305 = vmatprep.subr.bf16.mxu0 0
      %1306 = vmatpush1.bf16.msra.mxu0 %v1261
      %1307 = vmatprep.subr.bf16.mxu0 0
      %1308 = vmatpush1.bf16.msra.mxu0 %v1262
      %1309 = vmatprep.subr.bf16.mxu0 0
      %1310 = vmatpush1.bf16.msra.mxu0 %v1263
      %1311 = vmatprep.subr.bf16.mxu0 0
      %1312 = vmatpush1.bf16.msra.mxu0 %v1264
      %1313 = vmatprep.mubr.bf16.mxu0 %v1146
      %1314 = vmatmul.mubr.bf16.gmra.mrb[0].mxu0 %v1145
      %v1315 = vpop.f32.mrb[0].mxu0
      %v1316 = vadd.f32 0.0, %v1315
      %v1317 = vpop.f32.mrb[0].mxu0
      %v1318 = vpop.f32.mrb[0].mxu0
      %v1319 = vadd.f32 0.0, %v1318
      %v1320 = vpop.f32.mrb[0].mxu0
      %1321 = vmatprep.mubr.bf16.mxu0 %v1148
      %1322 = vmatmul.mubr.bf16.gmra.mrb[0].mxu0 %v1147
      %v1323 = vpop.f32.mrb[0].mxu0
      %v1324 = vadd.f32 0.0, %v1323
      %v1325 = vpop.f32.mrb[0].mxu0
      %v1326 = vpop.f32.mrb[0].mxu0
      %v1327 = vadd.f32 0.0, %v1326
      %v1328 = vpop.f32.mrb[0].mxu0
      %1329 = vmatprep.mubr.bf16.mxu0 %v1150
      %1330 = vmatmul.mubr.bf16.gmra.mrb[0].mxu0 %v1149
      %v1331 = vpop.f32.mrb[0].mxu0
      %v1332 = vadd.f32 0.0, %v1331
      %v1333 = vpop.f32.mrb[0].mxu0
      %v1334 = vpop.f32.mrb[0].mxu0
      %v1335 = vadd.f32 0.0, %v1334
      %v1336 = vpop.f32.mrb[0].mxu0
      %1337 = vmatprep.mubr.bf16.mxu0 %v1152
      %1338 = vmatmul.mubr.bf16.gmra.mrb[0].mxu0 %v1151
      %v1339 = vpop.f32.mrb[0].mxu0
      %v1340 = vadd.f32 0.0, %v1339
      %v1341 = vpop.f32.mrb[0].mxu0
      %v1342 = vpop.f32.mrb[0].mxu0
      %v1343 = vadd.f32 0.0, %v1342
      %v1344 = vpop.f32.mrb[0].mxu0
      %1345 = vdwg.mxu0
      %v1346 = vpack.c.bf16 %v1319, %v1316
      %v1347 = vpack.c.bf16 %v1327, %v1324
      %v1348 = vpack.c.bf16 %v1335, %v1332
      %v1349 = vpack.c.bf16 %v1343, %v1340
      %v1354 = vunpack.c.l.b16 %v1346
      %v1355 = vunpack.c.h.b16 %v1346
      %v1356 = vunpack.c.l.b16 %v1347
      %v1357 = vunpack.c.h.b16 %v1347
      %v1358 = vunpack.c.l.b16 %v1348
      %v1359 = vunpack.c.h.b16 %v1348
      %v1360 = vunpack.c.l.b16 %v1349
      %v1361 = vunpack.c.h.b16 %v1349
      %v1362 = vpack.c.b16 %v1354, %v1354
      %v1363 = vpack.c.b16 %v1355, %v1355
      %v1364 = vpack.c.b16 %v1356, %v1356
      %v1365 = vpack.c.b16 %v1357, %v1357
      %v1366 = vpack.c.b16 %v1358, %v1358
      %v1367 = vpack.c.b16 %v1359, %v1359
      %v1368 = vpack.c.b16 %v1360, %v1360
      %v1369 = vpack.c.b16 %v1361, %v1361
      %1378 = vst [vmem:[%s202] sm:$0xf] %v1362
      %1379 = vst [vmem:[%s202 + $0x4] sm:$0xf] %v1363
      %1380 = vst [vmem:[%s202 + $0x8] sm:$0xf] %v1364
      %1381 = vst [vmem:[%s202 + $0xc] sm:$0xf] %v1365
      %1382 = vst [vmem:[%s202 + $0x10] sm:$0xf] %v1366
      %1383 = vst [vmem:[%s202 + $0x14] sm:$0xf] %v1367
      %1384 = vst [vmem:[%s202 + $0x18] sm:$0xf] %v1368
      %1385 = vst [vmem:[%s202 + $0x1c] sm:$0xf] %v1369
      %s1386 = smul.u32 8, %s15
      %p1387 = scmp.lt.s32.totalorder %s1386, 15
      %s1388 = scalar_select %p1387, %s1386, 15
      %s1389 = smul.addr %s1388, 4
      %s1390 = scalar_lea.vmem %s4, %s1389
      // Predicated region
      $region37: #{hrnet_naive_concat_forward.3} parent=35 // pred_check
        %p1391 = pneg %p122
      $region38: #{hrnet_naive_concat_forward.3} parent=35 // pred_check_branch
        %1393 = sbr.rel (%p1391) target = $region40
      $region39: #{hrnet_naive_concat_forward.3} parent=35 // pred_region
        %s1394 = smul.u32 8, %s15
      $region40: #{hrnet_naive_concat_forward.3} parent=35 // pred_fallthru
        _
    $region36: #{hrnet_naive_concat_forward.3} parent=5 // pred_fallthru
      _
    %p1395 = scmp.le.s32.totalorder 2, %s10
    // Predicated region
    $region41: #{hrnet_naive_concat_forward.3} parent=5 // pred_check
      %p1396 = pneg %p1395
    $region42: #{hrnet_naive_concat_forward.3} parent=5 // pred_check_branch
      %1398 = sbr.rel (%p1396) target = $region44
    $region43: #{hrnet_naive_concat_forward.3} parent=5 // pred_region
      %s1399 = ssub.s32 %s10, 2
      // Predicated region
      $region45: #{hrnet_naive_concat_forward.3} parent=43 // pred_check
        %p1400 = pneg %p128
      $region46: #{hrnet_naive_concat_forward.3} parent=43 // pred_check_branch
        %1402 = sbr.rel (%p1400) target = $region48
      $region47: #{hrnet_naive_concat_forward.3} parent=43 // pred_region
        %s1403 = smul.u32 8, %s16
        %p1404 = scmp.lt.s32.totalorder %s1403, 15
        %s1405 = scalar_select %p1404, %s1403, 15
        %s1406 = smul.addr %s1405, 4
        %s1407 = scalar_lea.vmem %s4, %s1406
      $region48: #{hrnet_naive_concat_forward.3} parent=43 // pred_fallthru
        _
    $region44: #{hrnet_naive_concat_forward.3} parent=5 // pred_fallthru
      _
  $region6: #{hrnet_naive_concat_forward.3} parent=0 // loop_footer
    %s14 = sadd.s32 1, %s10
  $region7: #{hrnet_naive_concat_forward.3} parent=0 // loop_footer_branch
    %9 = sbr.rel target = $region3
  $region8: #{hrnet_naive_concat_forward.3} parent=0 // loop_exit
    _

</llo_original>
